<compile_context>
chip_gen: v6e
topology: v6e:2x2x1
jax: 0.10.0
libtpu: 0.0.40
codegen_flags: <defaults>
</compile_context>

<pallas_src>
import functools

import jax
import jax.numpy as jnp
from jax import lax
from jax.experimental import pallas as pl
from jax.experimental.pallas import tpu as pltpu

BN_EPS = 1e-5


# ---------------------------------------------------------------------------
# In-kernel helpers
# ---------------------------------------------------------------------------
def _pw_mac(w_ref, x):
    """1x1 conv as a VPU broadcast-multiply-accumulate (cin is tiny).

    w_ref : Ref of shape (cin, cout, 1)  -- BN scale already folded in.
    x     : (cin, P) f32 value.
    returns (cout, P) f32.
    """
    cin = x.shape[0]
    acc = w_ref[0] * x[0:1, :]
    for ci in range(1, cin):
        acc = acc + w_ref[ci] * x[ci:ci + 1, :]
    return acc


def _fused_ir_kernel(*refs, W, stride, expand, use_res):
    """Fused InvertedResidual for one image.

    Layout: channels in sublanes, flattened spatial (H*W) in lanes.
    """
    if expand:
        x_ref, w1_ref, b1_ref, *rest = refs
    else:
        x_ref, *rest = refs
    if stride == 2:
        wdw_ref, b2_ref, w3_ref, b3_ref, mask_ref, sel_ref, o_ref = rest
    else:
        wdw_ref, b2_ref, w3_ref, b3_ref, mask_ref, o_ref = rest

    x = x_ref[...].astype(jnp.float32)                        # (inp, P)

    # ---- 1) 1x1 expand + folded BN + ReLU6 --------------------------------
    if expand:
        hid = jnp.clip(_pw_mac(w1_ref, x) + b1_ref[...], 0.0, 6.0)
    else:
        hid = x                                               # hidden == inp

    # ---- 2) 3x3 depthwise (pad=1) + folded BN + ReLU6 ---------------------
    # On the flattened spatial axis a (dy, dx) tap is a lane shift by
    # dy*W + dx (pltpu.roll -> XLU slot, overlaps with the VPU MACs) times a
    # host-precomputed 0/1 validity mask that implements the zero halo.
    P = hid.shape[-1]
    acc = jnp.zeros_like(hid)
    for dy in (-1, 0, 1):
        for dx in (-1, 0, 1):
            t = (dy + 1) * 3 + (dx + 1)                       # torch (ky, kx) tap index
            s = dy * W + dx                                   # lane offset of the tap
            if s == 0:
                tap = hid                                     # centre tap: no roll, no mask
            else:
                tap = pltpu.roll(hid, (-s) % P, 1) * mask_ref[t]
            acc = acc + tap * wdw_ref[t]
    y = jnp.clip(acc + b2_ref[...], 0.0, 6.0)                 # (hidden, P)

    # ---- stride-2: pick the even-row / even-col centres -------------------
    if stride == 2:
        # 0/1 selection matrix (P, P_out) built on the host; one tiny MXU matmul.
        y = jnp.dot(y, sel_ref[...], preferred_element_type=jnp.float32)

    # ---- 3) 1x1 project + folded BN (+ fused residual) --------------------
    out = _pw_mac(w3_ref, y) + b3_ref[...]                    # (oup, P_out)
    if use_res:
        out = out + x
    o_ref[...] = out.astype(o_ref.dtype)


# ---------------------------------------------------------------------------
# Host-side wrapper
# ---------------------------------------------------------------------------
def fold_bn(gamma, beta, mean, var):
    scale = gamma / jnp.sqrt(var + BN_EPS)
    bias = beta - mean * scale
    return scale, bias


def inverted_residual(x_nchw, params, inp, oup, stride):
    """Pallas-backed forward of the PyTorch InvertedResidual (NCHW in/out)."""
    assert stride in (1, 2)
    n, c, h, w = x_nchw.shape
    assert c == inp
    hidden = params["hidden"]
    expand = params["expand_ratio"] != 1
    use_res = (stride == 1) and (inp == oup)

    p_in = h * w
    h_out = (h - 1) // stride + 1
    w_out = (w - 1) // stride + 1
    p_out = h_out * w_out

    # NCHW -> (N, C, H*W): a free reshape (same bytes), lane dim = H*W.
    x_flat = x_nchw.reshape(n, inp, p_in)

    args = [x_flat]
    in_specs = [pl.BlockSpec((None, inp, p_in), lambda b: (b, 0, 0))]

    if expand:
        s1, b1 = fold_bn(*params["bn1"])
        w1f = (params["w_exp"] * s1[:, None]).T[:, :, None]        # (inp, hidden, 1)
        args += [w1f, b1[:, None]]
        in_specs += [pl.BlockSpec((inp, hidden, 1), lambda b: (0, 0, 0)),
                     pl.BlockSpec((hidden, 1), lambda b: (0, 0))]

    s2, b2 = fold_bn(*params["bn2"])
    wdw_f = (params["w_dw"].reshape(hidden, 9) * s2[:, None]).T[:, :, None]  # (9, hidden, 1)
    s3, b3 = fold_bn(*params["bn3"])
    w3f = (params["w_proj"] * s3[:, None]).T[:, :, None]           # (hidden, oup, 1)

    # Host-precomputed 0/1 halo masks for all 9 depthwise taps: (9, 1, P).
    lane = jnp.arange(p_in, dtype=jnp.int32)
    row_idx = lane // w
    col_idx = lane % w
    masks = []
    for dy in (-1, 0, 1):
        for dx in (-1, 0, 1):
            valid = ((row_idx + dy >= 0) & (row_idx + dy < h) &
                     (col_idx + dx >= 0) & (col_idx + dx < w))
            masks.append(valid.astype(jnp.float32))
    mask = jnp.stack(masks).reshape(9, 1, p_in)

    args += [wdw_f, b2[:, None], w3f, b3[:, None], mask]
    in_specs += [pl.BlockSpec((9, hidden, 1), lambda b: (0, 0, 0)),
                 pl.BlockSpec((hidden, 1), lambda b: (0, 0)),
                 pl.BlockSpec((hidden, oup, 1), lambda b: (0, 0, 0)),
                 pl.BlockSpec((oup, 1), lambda b: (0, 0)),
                 pl.BlockSpec((9, 1, p_in), lambda b: (0, 0, 0))]

    if stride == 2:
        ho = jnp.arange(p_out, dtype=jnp.int32) // w_out
        wo = jnp.arange(p_out, dtype=jnp.int32) % w_out
        src = (2 * ho) * w + 2 * wo                                # centre pixel of each output
        sel = (lane[:, None] == src[None, :]).astype(jnp.float32)  # (p_in, p_out)
        args.append(sel)
        in_specs.append(pl.BlockSpec((p_in, p_out), lambda b: (0, 0)))

    kernel = functools.partial(_fused_ir_kernel, W=w, stride=stride,
                               expand=expand, use_res=use_res)

    flops = n * ((2 * inp * hidden * p_in if expand else 0)
                 + 2 * 9 * hidden * p_in
                 + 2 * hidden * oup * p_out
                 + (2 * hidden * p_in * p_out if stride == 2 else 0))
    bytes_accessed = 4 * (n * inp * p_in + n * oup * p_out
                          + hidden * (inp + 9 + oup + 3)
                          + 9 * p_in
                          + (p_in * p_out if stride == 2 else 0))

    out_flat = pl.pallas_call(
        kernel,
        out_shape=jax.ShapeDtypeStruct((n, oup, p_out), x_nchw.dtype),
        grid_spec=pltpu.PrefetchScalarGridSpec(
            num_scalar_prefetch=0,
            grid=(n,),                 # one image per step; steps are independent
            in_specs=in_specs,
            out_specs=pl.BlockSpec((None, oup, p_out), lambda b: (b, 0, 0)),
        ),
        compiler_params=pltpu.CompilerParams(
            dimension_semantics=("parallel",),
            vmem_limit_bytes=32 * 1024 * 1024,
        ),
        cost_estimate=pl.CostEstimate(flops=int(flops), transcendentals=0,
                                      bytes_accessed=int(bytes_accessed)),
    )(*args)

    return out_flat.reshape(n, oup, h_out, w_out)


# ---------------------------------------------------------------------------
# Deterministic synthetic parameters (torch-layout weights)
# ---------------------------------------------------------------------------
def init_params(key, inp, oup, expand_ratio):
    hidden = int(round(inp * expand_ratio))
    k = jax.random.split(key, 15)
    p = {"hidden": hidden, "expand_ratio": expand_ratio}

    def bn_init(k0, k1, k2, k3, ch):
        return (1.0 + 0.1 * jax.random.normal(k0, (ch,), jnp.float32),   # gamma
                0.05 * jax.random.normal(k1, (ch,), jnp.float32),        # beta
                0.05 * jax.random.normal(k2, (ch,), jnp.float32),        # running_mean
                0.5 + jax.random.uniform(k3, (ch,), jnp.float32))        # running_var

    if expand_ratio != 1:
        p["w_exp"] = 0.1 * jax.random.normal(k[0], (hidden, inp), jnp.float32)
        p["bn1"] = bn_init(k[1], k[2], k[3], k[4], hidden)
    p["w_dw"] = 0.1 * jax.random.normal(k[5], (hidden, 1, 3, 3), jnp.float32)
    p["bn2"] = bn_init(k[6], k[7], k[8], k[9], hidden)
    p["w_proj"] = 0.1 * jax.random.normal(k[10], (oup, hidden), jnp.float32)
    p["bn3"] = bn_init(k[11], k[12], k[13], k[14], oup)
    return p


# ---------------------------------------------------------------------------
# Pure-JAX reference (mirrors the PyTorch forward exactly) for verification
# ---------------------------------------------------------------------------
def _bn_ref(y, bn):
    gamma, beta, mean, var = bn
    shp = (1, -1, 1, 1)
    return ((y - mean.reshape(shp)) / jnp.sqrt(var.reshape(shp) + BN_EPS)
            * gamma.reshape(shp) + beta.reshape(shp))


def inverted_residual_ref(x, params, inp, oup, stride):
    use_res = (stride == 1) and (inp == oup)
    hidden = params["hidden"]
    dn = ("NCHW", "OIHW", "NCHW")
    y = x
    if params["expand_ratio"] != 1:
        w1 = params["w_exp"].reshape(hidden, inp, 1, 1)
        y = lax.conv_general_dilated(y, w1, (1, 1), "VALID", dimension_numbers=dn)
        y = jnp.clip(_bn_ref(y, params["bn1"]), 0.0, 6.0)
    y = lax.conv_general_dilated(y, params["w_dw"], (stride, stride),
                                 ((1, 1), (1, 1)), dimension_numbers=dn,
                                 feature_group_count=hidden)
    y = jnp.clip(_bn_ref(y, params["bn2"]), 0.0, 6.0)
    w3 = params["w_proj"].reshape(oup, hidden, 1, 1)
    y = lax.conv_general_dilated(y, w3, (1, 1), "VALID", dimension_numbers=dn)
    y = _bn_ref(y, params["bn3"])
    if use_res:
        y = y + x
    return y


# ---------------------------------------------------------------------------
if __name__ == "__main__":
    def run_case(case_key, n, inp, oup, stride, expand_ratio, h, w):
        kx, kp = jax.random.split(case_key)
        x = jax.random.normal(kx, (n, inp, h, w), jnp.float32)   # NCHW like PyTorch
        params = init_params(kp, inp, oup, expand_ratio)
        out = jax.block_until_ready(inverted_residual(x, params, inp, oup, stride))
        ref = jax.block_until_ready(inverted_residual_ref(x, params, inp, oup, stride))
        assert out.shape == ref.shape, (out.shape, ref.shape)
        err = float(jnp.max(jnp.abs(out - ref)))
        assert jnp.allclose(out, ref, atol=1e-3, rtol=1e-3), err

    key = jax.random.PRNGKey(0)
    k1, k2, k3 = jax.random.split(key, 3)
    # Primary spec config: InvertedResidual(inp=4, oup=4, stride=1, expand_ratio=4)
    run_case(k1, 2, 4, 4, 1, 4, 16, 16)
    # stride=2 (no residual) variant.
    run_case(k2, 2, 4, 8, 2, 4, 16, 16)
    # expand_ratio=1 (no expand conv) variant with residual.
    run_case(k3, 2, 8, 8, 1, 1, 16, 16)

    print("KERNEL_OK")
</pallas_src>

<mosaic_0001>
module attributes {stable_mosaic.version = 11 : i64} {
  func.func @_fused_ir_kernel(%arg0: i32, %arg1: memref<1x4x256xf32, #tpu.memory_space<vmem>>, %arg2: memref<4x16x1xf32, #tpu.memory_space<vmem>>, %arg3: memref<16x1xf32, #tpu.memory_space<vmem>>, %arg4: memref<9x16x1xf32, #tpu.memory_space<vmem>>, %arg5: memref<16x1xf32, #tpu.memory_space<vmem>>, %arg6: memref<16x4x1xf32, #tpu.memory_space<vmem>>, %arg7: memref<4x1xf32, #tpu.memory_space<vmem>>, %arg8: memref<9x1x256xf32, #tpu.memory_space<vmem>>, %arg9: memref<1x4x256xf32, #tpu.memory_space<vmem>>) attributes {dimension_semantics = [#tpu.dimension_semantics<parallel>], iteration_bounds = array<i64: 2>, scalar_prefetch = 0 : i64, scratch_operands = 0 : i64, tpu.core_type = #tpu.core_type<tc>, window_params = [{transform_indices = @transform_0, window_bounds = array<i64: 1, 4, 256>}, {pipeline_mode = #tpu.pipeline_mode<synchronous>, transform_indices = @transform_1, window_bounds = array<i64: 4, 16, 1>}, {pipeline_mode = #tpu.pipeline_mode<synchronous>, transform_indices = @transform_2, window_bounds = array<i64: 16, 1>}, {pipeline_mode = #tpu.pipeline_mode<synchronous>, transform_indices = @transform_3, window_bounds = array<i64: 9, 16, 1>}, {pipeline_mode = #tpu.pipeline_mode<synchronous>, transform_indices = @transform_4, window_bounds = array<i64: 16, 1>}, {pipeline_mode = #tpu.pipeline_mode<synchronous>, transform_indices = @transform_5, window_bounds = array<i64: 16, 4, 1>}, {pipeline_mode = #tpu.pipeline_mode<synchronous>, transform_indices = @transform_6, window_bounds = array<i64: 4, 1>}, {pipeline_mode = #tpu.pipeline_mode<synchronous>, transform_indices = @transform_7, window_bounds = array<i64: 9, 1, 256>}, {transform_indices = @transform_8, window_bounds = array<i64: 1, 4, 256>}]} {
    %c0 = arith.constant 0 : index
    %c0_0 = arith.constant 0 : index
    %c0_1 = arith.constant 0 : index
    %0 = vector.load %arg1[%c0, %c0_0, %c0_1] : memref<1x4x256xf32, #tpu.memory_space<vmem>>, vector<1x4x256xf32>
    %1 = vector.shape_cast %0 : vector<1x4x256xf32> to vector<4x256xf32>
    %c0_2 = arith.constant 0 : index
    %c0_3 = arith.constant 0 : index
    %c0_4 = arith.constant 0 : index
    %2 = vector.load %arg2[%c0_2, %c0_3, %c0_4] : memref<4x16x1xf32, #tpu.memory_space<vmem>>, vector<1x16x1xf32>
    %3 = vector.shape_cast %2 : vector<1x16x1xf32> to vector<16x1xf32>
    %4 = vector.extract_strided_slice %1 {offsets = [0, 0], sizes = [1, 256], strides = [1, 1]} : vector<4x256xf32> to vector<1x256xf32>
    %5 = vector.broadcast %3 : vector<16x1xf32> to vector<16x256xf32>
    %6 = vector.broadcast %4 : vector<1x256xf32> to vector<16x256xf32>
    %7 = arith.mulf %5, %6 : vector<16x256xf32>
    %c1 = arith.constant 1 : index
    %c0_5 = arith.constant 0 : index
    %c0_6 = arith.constant 0 : index
    %8 = vector.load %arg2[%c1, %c0_5, %c0_6] : memref<4x16x1xf32, #tpu.memory_space<vmem>>, vector<1x16x1xf32>
    %9 = vector.shape_cast %8 : vector<1x16x1xf32> to vector<16x1xf32>
    %10 = vector.extract_strided_slice %1 {offsets = [1, 0], sizes = [1, 256], strides = [1, 1]} : vector<4x256xf32> to vector<1x256xf32>
    %11 = vector.broadcast %9 : vector<16x1xf32> to vector<16x256xf32>
    %12 = vector.broadcast %10 : vector<1x256xf32> to vector<16x256xf32>
    %13 = arith.mulf %11, %12 : vector<16x256xf32>
    %14 = arith.addf %7, %13 : vector<16x256xf32>
    %c2 = arith.constant 2 : index
    %c0_7 = arith.constant 0 : index
    %c0_8 = arith.constant 0 : index
    %15 = vector.load %arg2[%c2, %c0_7, %c0_8] : memref<4x16x1xf32, #tpu.memory_space<vmem>>, vector<1x16x1xf32>
    %16 = vector.shape_cast %15 : vector<1x16x1xf32> to vector<16x1xf32>
    %17 = vector.extract_strided_slice %1 {offsets = [2, 0], sizes = [1, 256], strides = [1, 1]} : vector<4x256xf32> to vector<1x256xf32>
    %18 = vector.broadcast %16 : vector<16x1xf32> to vector<16x256xf32>
    %19 = vector.broadcast %17 : vector<1x256xf32> to vector<16x256xf32>
    %20 = arith.mulf %18, %19 : vector<16x256xf32>
    %21 = arith.addf %14, %20 : vector<16x256xf32>
    %c3 = arith.constant 3 : index
    %c0_9 = arith.constant 0 : index
    %c0_10 = arith.constant 0 : index
    %22 = vector.load %arg2[%c3, %c0_9, %c0_10] : memref<4x16x1xf32, #tpu.memory_space<vmem>>, vector<1x16x1xf32>
    %23 = vector.shape_cast %22 : vector<1x16x1xf32> to vector<16x1xf32>
    %24 = vector.extract_strided_slice %1 {offsets = [3, 0], sizes = [1, 256], strides = [1, 1]} : vector<4x256xf32> to vector<1x256xf32>
    %25 = vector.broadcast %23 : vector<16x1xf32> to vector<16x256xf32>
    %26 = vector.broadcast %24 : vector<1x256xf32> to vector<16x256xf32>
    %27 = arith.mulf %25, %26 : vector<16x256xf32>
    %28 = arith.addf %21, %27 : vector<16x256xf32>
    %c0_11 = arith.constant 0 : index
    %c0_12 = arith.constant 0 : index
    %29 = vector.load %arg3[%c0_11, %c0_12] : memref<16x1xf32, #tpu.memory_space<vmem>>, vector<16x1xf32>
    %30 = vector.broadcast %29 : vector<16x1xf32> to vector<16x256xf32>
    %31 = arith.addf %28, %30 : vector<16x256xf32>
    %cst = arith.constant 0.000000e+00 : f32
    %cst_13 = arith.constant 6.000000e+00 : f32
    %32 = vector.broadcast %cst : f32 to vector<16x256xf32>
    %33 = arith.maximumf %32, %31 : vector<16x256xf32>
    %34 = vector.broadcast %cst_13 : f32 to vector<16x256xf32>
    %35 = arith.minimumf %34, %33 : vector<16x256xf32>
    %cst_14 = arith.constant 0.000000e+00 : f32
    %36 = vector.broadcast %cst_14 : f32 to vector<16x256xf32>
    %c17_i32 = arith.constant 17 : i32
    %37 = tpu.dynamic_rotate %35 by %c17_i32 dim 1 : vector<16x256xf32>, i32 -> vector<16x256xf32>
    %c0_15 = arith.constant 0 : index
    %c0_16 = arith.constant 0 : index
    %c0_17 = arith.constant 0 : index
    %38 = vector.load %arg8[%c0_15, %c0_16, %c0_17] : memref<9x1x256xf32, #tpu.memory_space<vmem>>, vector<1x1x256xf32>
    %39 = vector.shape_cast %38 : vector<1x1x256xf32> to vector<1x256xf32>
    %40 = vector.broadcast %39 : vector<1x256xf32> to vector<16x256xf32>
    %41 = arith.mulf %37, %40 : vector<16x256xf32>
    %c0_18 = arith.constant 0 : index
    %c0_19 = arith.constant 0 : index
    %c0_20 = arith.constant 0 : index
    %42 = vector.load %arg4[%c0_18, %c0_19, %c0_20] : memref<9x16x1xf32, #tpu.memory_space<vmem>>, vector<1x16x1xf32>
    %43 = vector.shape_cast %42 : vector<1x16x1xf32> to vector<16x1xf32>
    %44 = vector.broadcast %43 : vector<16x1xf32> to vector<16x256xf32>
    %45 = arith.mulf %41, %44 : vector<16x256xf32>
    %46 = arith.addf %36, %45 : vector<16x256xf32>
    %c16_i32 = arith.constant 16 : i32
    %47 = tpu.dynamic_rotate %35 by %c16_i32 dim 1 : vector<16x256xf32>, i32 -> vector<16x256xf32>
    %c1_21 = arith.constant 1 : index
    %c0_22 = arith.constant 0 : index
    %c0_23 = arith.constant 0 : index
    %48 = vector.load %arg8[%c1_21, %c0_22, %c0_23] : memref<9x1x256xf32, #tpu.memory_space<vmem>>, vector<1x1x256xf32>
    %49 = vector.shape_cast %48 : vector<1x1x256xf32> to vector<1x256xf32>
    %50 = vector.broadcast %49 : vector<1x256xf32> to vector<16x256xf32>
    %51 = arith.mulf %47, %50 : vector<16x256xf32>
    %c1_24 = arith.constant 1 : index
    %c0_25 = arith.constant 0 : index
    %c0_26 = arith.constant 0 : index
    %52 = vector.load %arg4[%c1_24, %c0_25, %c0_26] : memref<9x16x1xf32, #tpu.memory_space<vmem>>, vector<1x16x1xf32>
    %53 = vector.shape_cast %52 : vector<1x16x1xf32> to vector<16x1xf32>
    %54 = vector.broadcast %53 : vector<16x1xf32> to vector<16x256xf32>
    %55 = arith.mulf %51, %54 : vector<16x256xf32>
    %56 = arith.addf %46, %55 : vector<16x256xf32>
    %c15_i32 = arith.constant 15 : i32
    %57 = tpu.dynamic_rotate %35 by %c15_i32 dim 1 : vector<16x256xf32>, i32 -> vector<16x256xf32>
    %c2_27 = arith.constant 2 : index
    %c0_28 = arith.constant 0 : index
    %c0_29 = arith.constant 0 : index
    %58 = vector.load %arg8[%c2_27, %c0_28, %c0_29] : memref<9x1x256xf32, #tpu.memory_space<vmem>>, vector<1x1x256xf32>
    %59 = vector.shape_cast %58 : vector<1x1x256xf32> to vector<1x256xf32>
    %60 = vector.broadcast %59 : vector<1x256xf32> to vector<16x256xf32>
    %61 = arith.mulf %57, %60 : vector<16x256xf32>
    %c2_30 = arith.constant 2 : index
    %c0_31 = arith.constant 0 : index
    %c0_32 = arith.constant 0 : index
    %62 = vector.load %arg4[%c2_30, %c0_31, %c0_32] : memref<9x16x1xf32, #tpu.memory_space<vmem>>, vector<1x16x1xf32>
    %63 = vector.shape_cast %62 : vector<1x16x1xf32> to vector<16x1xf32>
    %64 = vector.broadcast %63 : vector<16x1xf32> to vector<16x256xf32>
    %65 = arith.mulf %61, %64 : vector<16x256xf32>
    %66 = arith.addf %56, %65 : vector<16x256xf32>
    %c1_i32 = arith.constant 1 : i32
    %67 = tpu.dynamic_rotate %35 by %c1_i32 dim 1 : vector<16x256xf32>, i32 -> vector<16x256xf32>
    %c3_33 = arith.constant 3 : index
    %c0_34 = arith.constant 0 : index
    %c0_35 = arith.constant 0 : index
    %68 = vector.load %arg8[%c3_33, %c0_34, %c0_35] : memref<9x1x256xf32, #tpu.memory_space<vmem>>, vector<1x1x256xf32>
    %69 = vector.shape_cast %68 : vector<1x1x256xf32> to vector<1x256xf32>
    %70 = vector.broadcast %69 : vector<1x256xf32> to vector<16x256xf32>
    %71 = arith.mulf %67, %70 : vector<16x256xf32>
    %c3_36 = arith.constant 3 : index
    %c0_37 = arith.constant 0 : index
    %c0_38 = arith.constant 0 : index
    %72 = vector.load %arg4[%c3_36, %c0_37, %c0_38] : memref<9x16x1xf32, #tpu.memory_space<vmem>>, vector<1x16x1xf32>
    %73 = vector.shape_cast %72 : vector<1x16x1xf32> to vector<16x1xf32>
    %74 = vector.broadcast %73 : vector<16x1xf32> to vector<16x256xf32>
    %75 = arith.mulf %71, %74 : vector<16x256xf32>
    %76 = arith.addf %66, %75 : vector<16x256xf32>
    %c4 = arith.constant 4 : index
    %c0_39 = arith.constant 0 : index
    %c0_40 = arith.constant 0 : index
    %77 = vector.load %arg4[%c4, %c0_39, %c0_40] : memref<9x16x1xf32, #tpu.memory_space<vmem>>, vector<1x16x1xf32>
    %78 = vector.shape_cast %77 : vector<1x16x1xf32> to vector<16x1xf32>
    %79 = vector.broadcast %78 : vector<16x1xf32> to vector<16x256xf32>
    %80 = arith.mulf %35, %79 : vector<16x256xf32>
    %81 = arith.addf %76, %80 : vector<16x256xf32>
    %c255_i32 = arith.constant 255 : i32
    %82 = tpu.dynamic_rotate %35 by %c255_i32 dim 1 : vector<16x256xf32>, i32 -> vector<16x256xf32>
    %c5 = arith.constant 5 : index
    %c0_41 = arith.constant 0 : index
    %c0_42 = arith.constant 0 : index
    %83 = vector.load %arg8[%c5, %c0_41, %c0_42] : memref<9x1x256xf32, #tpu.memory_space<vmem>>, vector<1x1x256xf32>
    %84 = vector.shape_cast %83 : vector<1x1x256xf32> to vector<1x256xf32>
    %85 = vector.broadcast %84 : vector<1x256xf32> to vector<16x256xf32>
    %86 = arith.mulf %82, %85 : vector<16x256xf32>
    %c5_43 = arith.constant 5 : index
    %c0_44 = arith.constant 0 : index
    %c0_45 = arith.constant 0 : index
    %87 = vector.load %arg4[%c5_43, %c0_44, %c0_45] : memref<9x16x1xf32, #tpu.memory_space<vmem>>, vector<1x16x1xf32>
    %88 = vector.shape_cast %87 : vector<1x16x1xf32> to vector<16x1xf32>
    %89 = vector.broadcast %88 : vector<16x1xf32> to vector<16x256xf32>
    %90 = arith.mulf %86, %89 : vector<16x256xf32>
    %91 = arith.addf %81, %90 : vector<16x256xf32>
    %c241_i32 = arith.constant 241 : i32
    %92 = tpu.dynamic_rotate %35 by %c241_i32 dim 1 : vector<16x256xf32>, i32 -> vector<16x256xf32>
    %c6 = arith.constant 6 : index
    %c0_46 = arith.constant 0 : index
    %c0_47 = arith.constant 0 : index
    %93 = vector.load %arg8[%c6, %c0_46, %c0_47] : memref<9x1x256xf32, #tpu.memory_space<vmem>>, vector<1x1x256xf32>
    %94 = vector.shape_cast %93 : vector<1x1x256xf32> to vector<1x256xf32>
    %95 = vector.broadcast %94 : vector<1x256xf32> to vector<16x256xf32>
    %96 = arith.mulf %92, %95 : vector<16x256xf32>
    %c6_48 = arith.constant 6 : index
    %c0_49 = arith.constant 0 : index
    %c0_50 = arith.constant 0 : index
    %97 = vector.load %arg4[%c6_48, %c0_49, %c0_50] : memref<9x16x1xf32, #tpu.memory_space<vmem>>, vector<1x16x1xf32>
    %98 = vector.shape_cast %97 : vector<1x16x1xf32> to vector<16x1xf32>
    %99 = vector.broadcast %98 : vector<16x1xf32> to vector<16x256xf32>
    %100 = arith.mulf %96, %99 : vector<16x256xf32>
    %101 = arith.addf %91, %100 : vector<16x256xf32>
    %c240_i32 = arith.constant 240 : i32
    %102 = tpu.dynamic_rotate %35 by %c240_i32 dim 1 : vector<16x256xf32>, i32 -> vector<16x256xf32>
    %c7 = arith.constant 7 : index
    %c0_51 = arith.constant 0 : index
    %c0_52 = arith.constant 0 : index
    %103 = vector.load %arg8[%c7, %c0_51, %c0_52] : memref<9x1x256xf32, #tpu.memory_space<vmem>>, vector<1x1x256xf32>
    %104 = vector.shape_cast %103 : vector<1x1x256xf32> to vector<1x256xf32>
    %105 = vector.broadcast %104 : vector<1x256xf32> to vector<16x256xf32>
    %106 = arith.mulf %102, %105 : vector<16x256xf32>
    %c7_53 = arith.constant 7 : index
    %c0_54 = arith.constant 0 : index
    %c0_55 = arith.constant 0 : index
    %107 = vector.load %arg4[%c7_53, %c0_54, %c0_55] : memref<9x16x1xf32, #tpu.memory_space<vmem>>, vector<1x16x1xf32>
    %108 = vector.shape_cast %107 : vector<1x16x1xf32> to vector<16x1xf32>
    %109 = vector.broadcast %108 : vector<16x1xf32> to vector<16x256xf32>
    %110 = arith.mulf %106, %109 : vector<16x256xf32>
    %111 = arith.addf %101, %110 : vector<16x256xf32>
    %c239_i32 = arith.constant 239 : i32
    %112 = tpu.dynamic_rotate %35 by %c239_i32 dim 1 : vector<16x256xf32>, i32 -> vector<16x256xf32>
    %c8 = arith.constant 8 : index
    %c0_56 = arith.constant 0 : index
    %c0_57 = arith.constant 0 : index
    %113 = vector.load %arg8[%c8, %c0_56, %c0_57] : memref<9x1x256xf32, #tpu.memory_space<vmem>>, vector<1x1x256xf32>
    %114 = vector.shape_cast %113 : vector<1x1x256xf32> to vector<1x256xf32>
    %115 = vector.broadcast %114 : vector<1x256xf32> to vector<16x256xf32>
    %116 = arith.mulf %112, %115 : vector<16x256xf32>
    %c8_58 = arith.constant 8 : index
    %c0_59 = arith.constant 0 : index
    %c0_60 = arith.constant 0 : index
    %117 = vector.load %arg4[%c8_58, %c0_59, %c0_60] : memref<9x16x1xf32, #tpu.memory_space<vmem>>, vector<1x16x1xf32>
    %118 = vector.shape_cast %117 : vector<1x16x1xf32> to vector<16x1xf32>
    %119 = vector.broadcast %118 : vector<16x1xf32> to vector<16x256xf32>
    %120 = arith.mulf %116, %119 : vector<16x256xf32>
    %121 = arith.addf %111, %120 : vector<16x256xf32>
    %c0_61 = arith.constant 0 : index
    %c0_62 = arith.constant 0 : index
    %122 = vector.load %arg5[%c0_61, %c0_62] : memref<16x1xf32, #tpu.memory_space<vmem>>, vector<16x1xf32>
    %123 = vector.broadcast %122 : vector<16x1xf32> to vector<16x256xf32>
    %124 = arith.addf %121, %123 : vector<16x256xf32>
    %cst_63 = arith.constant 0.000000e+00 : f32
    %cst_64 = arith.constant 6.000000e+00 : f32
    %125 = vector.broadcast %cst_63 : f32 to vector<16x256xf32>
    %126 = arith.maximumf %125, %124 : vector<16x256xf32>
    %127 = vector.broadcast %cst_64 : f32 to vector<16x256xf32>
    %128 = arith.minimumf %127, %126 : vector<16x256xf32>
    %c0_65 = arith.constant 0 : index
    %c0_66 = arith.constant 0 : index
    %c0_67 = arith.constant 0 : index
    %129 = vector.load %arg6[%c0_65, %c0_66, %c0_67] : memref<16x4x1xf32, #tpu.memory_space<vmem>>, vector<1x4x1xf32>
    %130 = vector.shape_cast %129 : vector<1x4x1xf32> to vector<4x1xf32>
    %131 = vector.extract_strided_slice %128 {offsets = [0, 0], sizes = [1, 256], strides = [1, 1]} : vector<16x256xf32> to vector<1x256xf32>
    %132 = vector.broadcast %130 : vector<4x1xf32> to vector<4x256xf32>
    %133 = vector.broadcast %131 : vector<1x256xf32> to vector<4x256xf32>
    %134 = arith.mulf %132, %133 : vector<4x256xf32>
    %c1_68 = arith.constant 1 : index
    %c0_69 = arith.constant 0 : index
    %c0_70 = arith.constant 0 : index
    %135 = vector.load %arg6[%c1_68, %c0_69, %c0_70] : memref<16x4x1xf32, #tpu.memory_space<vmem>>, vector<1x4x1xf32>
    %136 = vector.shape_cast %135 : vector<1x4x1xf32> to vector<4x1xf32>
    %137 = vector.extract_strided_slice %128 {offsets = [1, 0], sizes = [1, 256], strides = [1, 1]} : vector<16x256xf32> to vector<1x256xf32>
    %138 = vector.broadcast %136 : vector<4x1xf32> to vector<4x256xf32>
    %139 = vector.broadcast %137 : vector<1x256xf32> to vector<4x256xf32>
    %140 = arith.mulf %138, %139 : vector<4x256xf32>
    %141 = arith.addf %134, %140 : vector<4x256xf32>
    %c2_71 = arith.constant 2 : index
    %c0_72 = arith.constant 0 : index
    %c0_73 = arith.constant 0 : index
    %142 = vector.load %arg6[%c2_71, %c0_72, %c0_73] : memref<16x4x1xf32, #tpu.memory_space<vmem>>, vector<1x4x1xf32>
    %143 = vector.shape_cast %142 : vector<1x4x1xf32> to vector<4x1xf32>
    %144 = vector.extract_strided_slice %128 {offsets = [2, 0], sizes = [1, 256], strides = [1, 1]} : vector<16x256xf32> to vector<1x256xf32>
    %145 = vector.broadcast %143 : vector<4x1xf32> to vector<4x256xf32>
    %146 = vector.broadcast %144 : vector<1x256xf32> to vector<4x256xf32>
    %147 = arith.mulf %145, %146 : vector<4x256xf32>
    %148 = arith.addf %141, %147 : vector<4x256xf32>
    %c3_74 = arith.constant 3 : index
    %c0_75 = arith.constant 0 : index
    %c0_76 = arith.constant 0 : index
    %149 = vector.load %arg6[%c3_74, %c0_75, %c0_76] : memref<16x4x1xf32, #tpu.memory_space<vmem>>, vector<1x4x1xf32>
    %150 = vector.shape_cast %149 : vector<1x4x1xf32> to vector<4x1xf32>
    %151 = vector.extract_strided_slice %128 {offsets = [3, 0], sizes = [1, 256], strides = [1, 1]} : vector<16x256xf32> to vector<1x256xf32>
    %152 = vector.broadcast %150 : vector<4x1xf32> to vector<4x256xf32>
    %153 = vector.broadcast %151 : vector<1x256xf32> to vector<4x256xf32>
    %154 = arith.mulf %152, %153 : vector<4x256xf32>
    %155 = arith.addf %148, %154 : vector<4x256xf32>
    %c4_77 = arith.constant 4 : index
    %c0_78 = arith.constant 0 : index
    %c0_79 = arith.constant 0 : index
    %156 = vector.load %arg6[%c4_77, %c0_78, %c0_79] : memref<16x4x1xf32, #tpu.memory_space<vmem>>, vector<1x4x1xf32>
    %157 = vector.shape_cast %156 : vector<1x4x1xf32> to vector<4x1xf32>
    %158 = vector.extract_strided_slice %128 {offsets = [4, 0], sizes = [1, 256], strides = [1, 1]} : vector<16x256xf32> to vector<1x256xf32>
    %159 = vector.broadcast %157 : vector<4x1xf32> to vector<4x256xf32>
    %160 = vector.broadcast %158 : vector<1x256xf32> to vector<4x256xf32>
    %161 = arith.mulf %159, %160 : vector<4x256xf32>
    %162 = arith.addf %155, %161 : vector<4x256xf32>
    %c5_80 = arith.constant 5 : index
    %c0_81 = arith.constant 0 : index
    %c0_82 = arith.constant 0 : index
    %163 = vector.load %arg6[%c5_80, %c0_81, %c0_82] : memref<16x4x1xf32, #tpu.memory_space<vmem>>, vector<1x4x1xf32>
    %164 = vector.shape_cast %163 : vector<1x4x1xf32> to vector<4x1xf32>
    %165 = vector.extract_strided_slice %128 {offsets = [5, 0], sizes = [1, 256], strides = [1, 1]} : vector<16x256xf32> to vector<1x256xf32>
    %166 = vector.broadcast %164 : vector<4x1xf32> to vector<4x256xf32>
    %167 = vector.broadcast %165 : vector<1x256xf32> to vector<4x256xf32>
    %168 = arith.mulf %166, %167 : vector<4x256xf32>
    %169 = arith.addf %162, %168 : vector<4x256xf32>
    %c6_83 = arith.constant 6 : index
    %c0_84 = arith.constant 0 : index
    %c0_85 = arith.constant 0 : index
    %170 = vector.load %arg6[%c6_83, %c0_84, %c0_85] : memref<16x4x1xf32, #tpu.memory_space<vmem>>, vector<1x4x1xf32>
    %171 = vector.shape_cast %170 : vector<1x4x1xf32> to vector<4x1xf32>
    %172 = vector.extract_strided_slice %128 {offsets = [6, 0], sizes = [1, 256], strides = [1, 1]} : vector<16x256xf32> to vector<1x256xf32>
    %173 = vector.broadcast %171 : vector<4x1xf32> to vector<4x256xf32>
    %174 = vector.broadcast %172 : vector<1x256xf32> to vector<4x256xf32>
    %175 = arith.mulf %173, %174 : vector<4x256xf32>
    %176 = arith.addf %169, %175 : vector<4x256xf32>
    %c7_86 = arith.constant 7 : index
    %c0_87 = arith.constant 0 : index
    %c0_88 = arith.constant 0 : index
    %177 = vector.load %arg6[%c7_86, %c0_87, %c0_88] : memref<16x4x1xf32, #tpu.memory_space<vmem>>, vector<1x4x1xf32>
    %178 = vector.shape_cast %177 : vector<1x4x1xf32> to vector<4x1xf32>
    %179 = vector.extract_strided_slice %128 {offsets = [7, 0], sizes = [1, 256], strides = [1, 1]} : vector<16x256xf32> to vector<1x256xf32>
    %180 = vector.broadcast %178 : vector<4x1xf32> to vector<4x256xf32>
    %181 = vector.broadcast %179 : vector<1x256xf32> to vector<4x256xf32>
    %182 = arith.mulf %180, %181 : vector<4x256xf32>
    %183 = arith.addf %176, %182 : vector<4x256xf32>
    %c8_89 = arith.constant 8 : index
    %c0_90 = arith.constant 0 : index
    %c0_91 = arith.constant 0 : index
    %184 = vector.load %arg6[%c8_89, %c0_90, %c0_91] : memref<16x4x1xf32, #tpu.memory_space<vmem>>, vector<1x4x1xf32>
    %185 = vector.shape_cast %184 : vector<1x4x1xf32> to vector<4x1xf32>
    %186 = vector.extract_strided_slice %128 {offsets = [8, 0], sizes = [1, 256], strides = [1, 1]} : vector<16x256xf32> to vector<1x256xf32>
    %187 = vector.broadcast %185 : vector<4x1xf32> to vector<4x256xf32>
    %188 = vector.broadcast %186 : vector<1x256xf32> to vector<4x256xf32>
    %189 = arith.mulf %187, %188 : vector<4x256xf32>
    %190 = arith.addf %183, %189 : vector<4x256xf32>
    %c9 = arith.constant 9 : index
    %c0_92 = arith.constant 0 : index
    %c0_93 = arith.constant 0 : index
    %191 = vector.load %arg6[%c9, %c0_92, %c0_93] : memref<16x4x1xf32, #tpu.memory_space<vmem>>, vector<1x4x1xf32>
    %192 = vector.shape_cast %191 : vector<1x4x1xf32> to vector<4x1xf32>
    %193 = vector.extract_strided_slice %128 {offsets = [9, 0], sizes = [1, 256], strides = [1, 1]} : vector<16x256xf32> to vector<1x256xf32>
    %194 = vector.broadcast %192 : vector<4x1xf32> to vector<4x256xf32>
    %195 = vector.broadcast %193 : vector<1x256xf32> to vector<4x256xf32>
    %196 = arith.mulf %194, %195 : vector<4x256xf32>
    %197 = arith.addf %190, %196 : vector<4x256xf32>
    %c10 = arith.constant 10 : index
    %c0_94 = arith.constant 0 : index
    %c0_95 = arith.constant 0 : index
    %198 = vector.load %arg6[%c10, %c0_94, %c0_95] : memref<16x4x1xf32, #tpu.memory_space<vmem>>, vector<1x4x1xf32>
    %199 = vector.shape_cast %198 : vector<1x4x1xf32> to vector<4x1xf32>
    %200 = vector.extract_strided_slice %128 {offsets = [10, 0], sizes = [1, 256], strides = [1, 1]} : vector<16x256xf32> to vector<1x256xf32>
    %201 = vector.broadcast %199 : vector<4x1xf32> to vector<4x256xf32>
    %202 = vector.broadcast %200 : vector<1x256xf32> to vector<4x256xf32>
    %203 = arith.mulf %201, %202 : vector<4x256xf32>
    %204 = arith.addf %197, %203 : vector<4x256xf32>
    %c11 = arith.constant 11 : index
    %c0_96 = arith.constant 0 : index
    %c0_97 = arith.constant 0 : index
    %205 = vector.load %arg6[%c11, %c0_96, %c0_97] : memref<16x4x1xf32, #tpu.memory_space<vmem>>, vector<1x4x1xf32>
    %206 = vector.shape_cast %205 : vector<1x4x1xf32> to vector<4x1xf32>
    %207 = vector.extract_strided_slice %128 {offsets = [11, 0], sizes = [1, 256], strides = [1, 1]} : vector<16x256xf32> to vector<1x256xf32>
    %208 = vector.broadcast %206 : vector<4x1xf32> to vector<4x256xf32>
    %209 = vector.broadcast %207 : vector<1x256xf32> to vector<4x256xf32>
    %210 = arith.mulf %208, %209 : vector<4x256xf32>
    %211 = arith.addf %204, %210 : vector<4x256xf32>
    %c12 = arith.constant 12 : index
    %c0_98 = arith.constant 0 : index
    %c0_99 = arith.constant 0 : index
    %212 = vector.load %arg6[%c12, %c0_98, %c0_99] : memref<16x4x1xf32, #tpu.memory_space<vmem>>, vector<1x4x1xf32>
    %213 = vector.shape_cast %212 : vector<1x4x1xf32> to vector<4x1xf32>
    %214 = vector.extract_strided_slice %128 {offsets = [12, 0], sizes = [1, 256], strides = [1, 1]} : vector<16x256xf32> to vector<1x256xf32>
    %215 = vector.broadcast %213 : vector<4x1xf32> to vector<4x256xf32>
    %216 = vector.broadcast %214 : vector<1x256xf32> to vector<4x256xf32>
    %217 = arith.mulf %215, %216 : vector<4x256xf32>
    %218 = arith.addf %211, %217 : vector<4x256xf32>
    %c13 = arith.constant 13 : index
    %c0_100 = arith.constant 0 : index
    %c0_101 = arith.constant 0 : index
    %219 = vector.load %arg6[%c13, %c0_100, %c0_101] : memref<16x4x1xf32, #tpu.memory_space<vmem>>, vector<1x4x1xf32>
    %220 = vector.shape_cast %219 : vector<1x4x1xf32> to vector<4x1xf32>
    %221 = vector.extract_strided_slice %128 {offsets = [13, 0], sizes = [1, 256], strides = [1, 1]} : vector<16x256xf32> to vector<1x256xf32>
    %222 = vector.broadcast %220 : vector<4x1xf32> to vector<4x256xf32>
    %223 = vector.broadcast %221 : vector<1x256xf32> to vector<4x256xf32>
    %224 = arith.mulf %222, %223 : vector<4x256xf32>
    %225 = arith.addf %218, %224 : vector<4x256xf32>
    %c14 = arith.constant 14 : index
    %c0_102 = arith.constant 0 : index
    %c0_103 = arith.constant 0 : index
    %226 = vector.load %arg6[%c14, %c0_102, %c0_103] : memref<16x4x1xf32, #tpu.memory_space<vmem>>, vector<1x4x1xf32>
    %227 = vector.shape_cast %226 : vector<1x4x1xf32> to vector<4x1xf32>
    %228 = vector.extract_strided_slice %128 {offsets = [14, 0], sizes = [1, 256], strides = [1, 1]} : vector<16x256xf32> to vector<1x256xf32>
    %229 = vector.broadcast %227 : vector<4x1xf32> to vector<4x256xf32>
    %230 = vector.broadcast %228 : vector<1x256xf32> to vector<4x256xf32>
    %231 = arith.mulf %229, %230 : vector<4x256xf32>
    %232 = arith.addf %225, %231 : vector<4x256xf32>
    %c15 = arith.constant 15 : index
    %c0_104 = arith.constant 0 : index
    %c0_105 = arith.constant 0 : index
    %233 = vector.load %arg6[%c15, %c0_104, %c0_105] : memref<16x4x1xf32, #tpu.memory_space<vmem>>, vector<1x4x1xf32>
    %234 = vector.shape_cast %233 : vector<1x4x1xf32> to vector<4x1xf32>
    %235 = vector.extract_strided_slice %128 {offsets = [15, 0], sizes = [1, 256], strides = [1, 1]} : vector<16x256xf32> to vector<1x256xf32>
    %236 = vector.broadcast %234 : vector<4x1xf32> to vector<4x256xf32>
    %237 = vector.broadcast %235 : vector<1x256xf32> to vector<4x256xf32>
    %238 = arith.mulf %236, %237 : vector<4x256xf32>
    %239 = arith.addf %232, %238 : vector<4x256xf32>
    %c0_106 = arith.constant 0 : index
    %c0_107 = arith.constant 0 : index
    %240 = vector.load %arg7[%c0_106, %c0_107] : memref<4x1xf32, #tpu.memory_space<vmem>>, vector<4x1xf32>
    %241 = vector.broadcast %240 : vector<4x1xf32> to vector<4x256xf32>
    %242 = arith.addf %239, %241 : vector<4x256xf32>
    %243 = arith.addf %242, %1 : vector<4x256xf32>
    %c0_108 = arith.constant 0 : index
    %c0_109 = arith.constant 0 : index
    %c0_110 = arith.constant 0 : index
    %244 = vector.load %arg9[%c0_108, %c0_109, %c0_110] : memref<1x4x256xf32, #tpu.memory_space<vmem>>, vector<1x4x256xf32>
    %245 = vector.shape_cast %244 : vector<1x4x256xf32> to vector<4x256xf32>
    %246 = vector.shape_cast %243 : vector<4x256xf32> to vector<1x4x256xf32>
    tpu.vector_store %arg9[%c0_108, %c0_109, %c0_110], %246 {strides = array<i32>} : memref<1x4x256xf32, #tpu.memory_space<vmem>>, vector<1x4x256xf32>,
    return
  }
  func.func @transform_0(%arg0: i32) -> (i32, i32, i32) {
    %c0_i32 = arith.constant 0 : i32
    %c0_i32_0 = arith.constant 0 : i32
    %c0_i32_1 = arith.constant 0 : i32
    return %arg0, %c0_i32, %c0_i32_0 : i32, i32, i32
  }
  func.func @transform_1(%arg0: i32) -> (i32, i32, i32) {
    %c0_i32 = arith.constant 0 : i32
    %c0_i32_0 = arith.constant 0 : i32
    %c0_i32_1 = arith.constant 0 : i32
    %c0_i32_2 = arith.constant 0 : i32
    return %c0_i32, %c0_i32_0, %c0_i32_1 : i32, i32, i32
  }
  func.func @transform_2(%arg0: i32) -> (i32, i32) {
    %c0_i32 = arith.constant 0 : i32
    %c0_i32_0 = arith.constant 0 : i32
    %c0_i32_1 = arith.constant 0 : i32
    return %c0_i32, %c0_i32_0 : i32, i32
  }
  func.func @transform_3(%arg0: i32) -> (i32, i32, i32) {
    %c0_i32 = arith.constant 0 : i32
    %c0_i32_0 = arith.constant 0 : i32
    %c0_i32_1 = arith.constant 0 : i32
    %c0_i32_2 = arith.constant 0 : i32
    return %c0_i32, %c0_i32_0, %c0_i32_1 : i32, i32, i32
  }
  func.func @transform_4(%arg0: i32) -> (i32, i32) {
    %c0_i32 = arith.constant 0 : i32
    %c0_i32_0 = arith.constant 0 : i32
    %c0_i32_1 = arith.constant 0 : i32
    return %c0_i32, %c0_i32_0 : i32, i32
  }
  func.func @transform_5(%arg0: i32) -> (i32, i32, i32) {
    %c0_i32 = arith.constant 0 : i32
    %c0_i32_0 = arith.constant 0 : i32
    %c0_i32_1 = arith.constant 0 : i32
    %c0_i32_2 = arith.constant 0 : i32
    return %c0_i32, %c0_i32_0, %c0_i32_1 : i32, i32, i32
  }
  func.func @transform_6(%arg0: i32) -> (i32, i32) {
    %c0_i32 = arith.constant 0 : i32
    %c0_i32_0 = arith.constant 0 : i32
    %c0_i32_1 = arith.constant 0 : i32
    return %c0_i32, %c0_i32_0 : i32, i32
  }
  func.func @transform_7(%arg0: i32) -> (i32, i32, i32) {
    %c0_i32 = arith.constant 0 : i32
    %c0_i32_0 = arith.constant 0 : i32
    %c0_i32_1 = arith.constant 0 : i32
    %c0_i32_2 = arith.constant 0 : i32
    return %c0_i32, %c0_i32_0, %c0_i32_1 : i32, i32, i32
  }
  func.func @transform_8(%arg0: i32) -> (i32, i32, i32) {
    %c0_i32 = arith.constant 0 : i32
    %c0_i32_0 = arith.constant 0 : i32
    %c0_i32_1 = arith.constant 0 : i32
    return %arg0, %c0_i32, %c0_i32_0 : i32, i32, i32
  }
}

</mosaic_0001>

<llo_original>
// kernel: tpu_custom_call.1
$region0: #{tpu_custom_call.1}
  #allocation0 [shape = 'u32[]', space=smem, size = 0x4, offset = 0x4, fixed_abs, tag = 'smem constant byte address 0x4 - core index']
  #allocation1 [shape = 'u32[144,128]{1,0:T(1,128)}', space=vmem, size = 0x12000, scoped, tag = 'internal scratch']
  %s0 = inlined_call_operand.vmem [shape: f32[2,4,256], index: 0, kind: input, shape index: {}]
  %s1 = inlined_call_operand.vmem [shape: f32[4,16,1], index: 1, kind: input, shape index: {}]
  %s2 = inlined_call_operand.vmem [shape: f32[16,1], index: 2, kind: input, shape index: {}]
  %s3 = inlined_call_operand.vmem [shape: f32[9,16,1], index: 3, kind: input, shape index: {}]
  %s4 = inlined_call_operand.vmem [shape: f32[16,1], index: 4, kind: input, shape index: {}]
  %s5 = inlined_call_operand.vmem [shape: f32[16,4,1], index: 5, kind: input, shape index: {}]
  %s6 = inlined_call_operand.vmem [shape: f32[4,1], index: 6, kind: input, shape index: {}]
  %s7 = inlined_call_operand.vmem [shape: f32[9,1,256], index: 7, kind: input, shape index: {}]
  %s8 = inlined_call_operand.hbm [shape: f32[2,4,256], index: 8, kind: output, shape index: {}]
  %s9 = sld [smem:[#allocation0]]
  $region65: #{tpu_custom_call.1} parent=0
    _
  %s11 = ssub.s32 1, %s9
  %s12 = scalar_select 0, %s11, %s9
  $region1: #{tpu_custom_call.1} parent=0
    #allocation2 [shape = 'u8[8192]{0}', space=vmem, size = 0x2000, scoped, tag = 'output window, operand 0']
    #allocation3 [shape = 's32[2]{0}', space=sflag, size = 0x8, scoped, tag = 'scoped memory for tpu_custom_call.1']
    %13 = vsyncpa [#allocation3], 0
    %s14 = scalar_lea.sflag [#allocation3], 1
    %15 = vsyncpa %s14, 0
    loop: start=0, step=1, limit=4
    $region2: #{tpu_custom_call.1} parent=1 // loop_pre_header
      _
    $region3: #{tpu_custom_call.1} parent=1 // loop_header
      %s17 = sphi 0, %s21
      %p18 = scmp.ge.s32.totalorder %s17, 4
      %s27 = sphi 0, %s29
      %s30 = sphi 0, %s27
      %s31 = sphi 0, %s30
      %s47 = sphi 0, %s31
      %s51 = sphi 0, %s51
      %s53 = sphi 0, %s51
      %s54 = sphi 0, %s53
      %s68 = sphi 0, %s54
      %s72 = sphi 0, %s72
      %s74 = sphi 0, %s72
      %s75 = sphi 0, %s74
      %s89 = sphi 0, %s75
      %s93 = sphi 0, %s93
      %s95 = sphi 0, %s93
      %s96 = sphi 0, %s95
      %s110 = sphi 0, %s96
      %s114 = sphi 0, %s114
      %s116 = sphi 0, %s114
      %s117 = sphi 0, %s116
      %s131 = sphi 0, %s117
      %s135 = sphi 0, %s135
      %s137 = sphi 0, %s135
      %s138 = sphi 0, %s137
      %s152 = sphi 0, %s138
      %s156 = sphi 0, %s156
      %s158 = sphi 0, %s156
      %s159 = sphi 0, %s158
      %s173 = sphi 0, %s159
      %s177 = sphi 0, %s177
      %s179 = sphi 0, %s177
      %s180 = sphi 0, %s179
      %s194 = sphi 0, %s180
      %s200 = sphi 0, %s202
      %s203 = sphi 0, %s200
      %s204 = sphi 0, %s203
      %s220 = sphi 0, %s204
    $region4: #{tpu_custom_call.1} parent=1 // loop_header_branch
      %20 = sbr.rel (%p18) target = $region8
    $region5: #{tpu_custom_call.1} parent=1 // loop_body
      %s22 = ssub.s32 %s17, 1
      %s23 = ssub.s32 %s17, 2
      %s24 = sadd.s32 %s17, 1
      %s25 = ssub.s32 %s17, %s24
      %p26 = scmp.eq.s32.totalorder %s25, 0
      %s28 = sadd.s32 %s27, 1
      %s29 = scalar_select %p26, %s27, %s28
      %p32 = pneg %p26
      %p33 = scmp.eq.s32.totalorder %s17, 1
      %p34 = por %p32, %p33
      %p35 = scmp.ne.s32.totalorder %s27, %s30
      %p36 = scmp.eq.s32.totalorder %s17, 0
      %p37 = por %p35, %p36
      %p38 = scmp.ne.s32.totalorder %s27, %s30
      %p39 = scmp.eq.s32.totalorder %s22, 1
      %p40 = por %p38, %p39
      %p41 = scmp.ne.s32.totalorder %s30, %s31
      %p42 = scmp.eq.s32.totalorder %s22, 0
      %p43 = por %p41, %p42
      %p44 = scmp.ne.s32.totalorder %s30, %s31
      %p45 = scmp.eq.s32.totalorder %s23, 1
      %p46 = por %p44, %p45
      %p48 = scmp.ne.s32.totalorder %s31, %s47
      %p49 = scmp.eq.s32.totalorder %s23, 0
      %p50 = por %p48, %p49
      %s52 = sadd.s32 %s51, 1
      %p55 = scmp.eq.s32.totalorder %s17, 1
      %p56 = scmp.ne.s32.totalorder %s51, %s53
      %p57 = scmp.eq.s32.totalorder %s17, 0
      %p58 = por %p56, %p57
      %p59 = scmp.ne.s32.totalorder %s51, %s53
      %p60 = scmp.eq.s32.totalorder %s22, 1
      %p61 = por %p59, %p60
      %p62 = scmp.ne.s32.totalorder %s53, %s54
      %p63 = scmp.eq.s32.totalorder %s22, 0
      %p64 = por %p62, %p63
      %p65 = scmp.ne.s32.totalorder %s53, %s54
      %p66 = scmp.eq.s32.totalorder %s23, 1
      %p67 = por %p65, %p66
      %p69 = scmp.ne.s32.totalorder %s54, %s68
      %p70 = scmp.eq.s32.totalorder %s23, 0
      %p71 = por %p69, %p70
      %s73 = sadd.s32 %s72, 1
      %p76 = scmp.eq.s32.totalorder %s17, 1
      %p77 = scmp.ne.s32.totalorder %s72, %s74
      %p78 = scmp.eq.s32.totalorder %s17, 0
      %p79 = por %p77, %p78
      %p80 = scmp.ne.s32.totalorder %s72, %s74
      %p81 = scmp.eq.s32.totalorder %s22, 1
      %p82 = por %p80, %p81
      %p83 = scmp.ne.s32.totalorder %s74, %s75
      %p84 = scmp.eq.s32.totalorder %s22, 0
      %p85 = por %p83, %p84
      %p86 = scmp.ne.s32.totalorder %s74, %s75
      %p87 = scmp.eq.s32.totalorder %s23, 1
      %p88 = por %p86, %p87
      %p90 = scmp.ne.s32.totalorder %s75, %s89
      %p91 = scmp.eq.s32.totalorder %s23, 0
      %p92 = por %p90, %p91
      %s94 = sadd.s32 %s93, 1
      %p97 = scmp.eq.s32.totalorder %s17, 1
      %p98 = scmp.ne.s32.totalorder %s93, %s95
      %p99 = scmp.eq.s32.totalorder %s17, 0
      %p100 = por %p98, %p99
      %p101 = scmp.ne.s32.totalorder %s93, %s95
      %p102 = scmp.eq.s32.totalorder %s22, 1
      %p103 = por %p101, %p102
      %p104 = scmp.ne.s32.totalorder %s95, %s96
      %p105 = scmp.eq.s32.totalorder %s22, 0
      %p106 = por %p104, %p105
      %p107 = scmp.ne.s32.totalorder %s95, %s96
      %p108 = scmp.eq.s32.totalorder %s23, 1
      %p109 = por %p107, %p108
      %p111 = scmp.ne.s32.totalorder %s96, %s110
      %p112 = scmp.eq.s32.totalorder %s23, 0
      %p113 = por %p111, %p112
      %s115 = sadd.s32 %s114, 1
      %p118 = scmp.eq.s32.totalorder %s17, 1
      %p119 = scmp.ne.s32.totalorder %s114, %s116
      %p120 = scmp.eq.s32.totalorder %s17, 0
      %p121 = por %p119, %p120
      %p122 = scmp.ne.s32.totalorder %s114, %s116
      %p123 = scmp.eq.s32.totalorder %s22, 1
      %p124 = por %p122, %p123
      %p125 = scmp.ne.s32.totalorder %s116, %s117
      %p126 = scmp.eq.s32.totalorder %s22, 0
      %p127 = por %p125, %p126
      %p128 = scmp.ne.s32.totalorder %s116, %s117
      %p129 = scmp.eq.s32.totalorder %s23, 1
      %p130 = por %p128, %p129
      %p132 = scmp.ne.s32.totalorder %s117, %s131
      %p133 = scmp.eq.s32.totalorder %s23, 0
      %p134 = por %p132, %p133
      %s136 = sadd.s32 %s135, 1
      %p139 = scmp.eq.s32.totalorder %s17, 1
      %p140 = scmp.ne.s32.totalorder %s135, %s137
      %p141 = scmp.eq.s32.totalorder %s17, 0
      %p142 = por %p140, %p141
      %p143 = scmp.ne.s32.totalorder %s135, %s137
      %p144 = scmp.eq.s32.totalorder %s22, 1
      %p145 = por %p143, %p144
      %p146 = scmp.ne.s32.totalorder %s137, %s138
      %p147 = scmp.eq.s32.totalorder %s22, 0
      %p148 = por %p146, %p147
      %p149 = scmp.ne.s32.totalorder %s137, %s138
      %p150 = scmp.eq.s32.totalorder %s23, 1
      %p151 = por %p149, %p150
      %p153 = scmp.ne.s32.totalorder %s138, %s152
      %p154 = scmp.eq.s32.totalorder %s23, 0
      %p155 = por %p153, %p154
      %s157 = sadd.s32 %s156, 1
      %p160 = scmp.eq.s32.totalorder %s17, 1
      %p161 = scmp.ne.s32.totalorder %s156, %s158
      %p162 = scmp.eq.s32.totalorder %s17, 0
      %p163 = por %p161, %p162
      %p164 = scmp.ne.s32.totalorder %s156, %s158
      %p165 = scmp.eq.s32.totalorder %s22, 1
      %p166 = por %p164, %p165
      %p167 = scmp.ne.s32.totalorder %s158, %s159
      %p168 = scmp.eq.s32.totalorder %s22, 0
      %p169 = por %p167, %p168
      %p170 = scmp.ne.s32.totalorder %s158, %s159
      %p171 = scmp.eq.s32.totalorder %s23, 1
      %p172 = por %p170, %p171
      %p174 = scmp.ne.s32.totalorder %s159, %s173
      %p175 = scmp.eq.s32.totalorder %s23, 0
      %p176 = por %p174, %p175
      %s178 = sadd.s32 %s177, 1
      %p181 = scmp.eq.s32.totalorder %s17, 1
      %p182 = scmp.ne.s32.totalorder %s177, %s179
      %p183 = scmp.eq.s32.totalorder %s17, 0
      %p184 = por %p182, %p183
      %p185 = scmp.ne.s32.totalorder %s177, %s179
      %p186 = scmp.eq.s32.totalorder %s22, 1
      %p187 = por %p185, %p186
      %p188 = scmp.ne.s32.totalorder %s179, %s180
      %p189 = scmp.eq.s32.totalorder %s22, 0
      %p190 = por %p188, %p189
      %p191 = scmp.ne.s32.totalorder %s179, %s180
      %p192 = scmp.eq.s32.totalorder %s23, 1
      %p193 = por %p191, %p192
      %p195 = scmp.ne.s32.totalorder %s180, %s194
      %p196 = scmp.eq.s32.totalorder %s23, 0
      %p197 = por %p195, %p196
      %s198 = ssub.s32 %s17, %s24
      %p199 = scmp.eq.s32.totalorder %s198, 0
      %s201 = sadd.s32 %s200, 1
      %s202 = scalar_select %p199, %s200, %s201
      %p205 = pneg %p199
      %p206 = scmp.eq.s32.totalorder %s17, 1
      %p207 = por %p205, %p206
      %p208 = scmp.ne.s32.totalorder %s200, %s203
      %p209 = scmp.eq.s32.totalorder %s17, 0
      %p210 = por %p208, %p209
      %p211 = scmp.ne.s32.totalorder %s200, %s203
      %p212 = scmp.eq.s32.totalorder %s22, 1
      %p213 = por %p211, %p212
      %p214 = scmp.ne.s32.totalorder %s203, %s204
      %p215 = scmp.eq.s32.totalorder %s22, 0
      %p216 = por %p214, %p215
      %p217 = scmp.ne.s32.totalorder %s203, %s204
      %p218 = scmp.eq.s32.totalorder %s23, 1
      %p219 = por %p217, %p218
      %p221 = scmp.ne.s32.totalorder %s204, %s220
      %p222 = scmp.eq.s32.totalorder %s23, 0
      %p223 = por %p221, %p222
      %p224 = scmp.le.s32.totalorder 1, %s17
      %p225 = scmp.lt.s32.totalorder %s17, 3
      %p226 = pnand %p224, %p225
      %p227 = pneg %p226
      // Predicated region
      $region9: #{tpu_custom_call.1} parent=5 // pred_check
        _
      $region10: #{tpu_custom_call.1} parent=5 // pred_check_branch
        %229 = sbr.rel (%p226) target = $region12
      $region11: #{tpu_custom_call.1} parent=5 // pred_region
        %s230 = ssub.s32 %s17, 1
        // Predicated region
        $region13: #{tpu_custom_call.1} parent=11 // pred_check
          %p231 = pneg %p64
        $region14: #{tpu_custom_call.1} parent=11 // pred_check_branch
          %233 = sbr.rel (%p231) target = $region16
        $region15: #{tpu_custom_call.1} parent=11 // pred_region
          _
        $region16: #{tpu_custom_call.1} parent=11 // pred_fallthru
          _
        // Predicated region
        $region17: #{tpu_custom_call.1} parent=11 // pred_check
          %p234 = pneg %p85
        $region18: #{tpu_custom_call.1} parent=11 // pred_check_branch
          %236 = sbr.rel (%p234) target = $region20
        $region19: #{tpu_custom_call.1} parent=11 // pred_region
          _
        $region20: #{tpu_custom_call.1} parent=11 // pred_fallthru
          _
        // Predicated region
        $region21: #{tpu_custom_call.1} parent=11 // pred_check
          %p237 = pneg %p106
        $region22: #{tpu_custom_call.1} parent=11 // pred_check_branch
          %239 = sbr.rel (%p237) target = $region24
        $region23: #{tpu_custom_call.1} parent=11 // pred_region
          _
        $region24: #{tpu_custom_call.1} parent=11 // pred_fallthru
          _
        // Predicated region
        $region25: #{tpu_custom_call.1} parent=11 // pred_check
          %p240 = pneg %p127
        $region26: #{tpu_custom_call.1} parent=11 // pred_check_branch
          %242 = sbr.rel (%p240) target = $region28
        $region27: #{tpu_custom_call.1} parent=11 // pred_region
          _
        $region28: #{tpu_custom_call.1} parent=11 // pred_fallthru
          _
        // Predicated region
        $region29: #{tpu_custom_call.1} parent=11 // pred_check
          %p243 = pneg %p148
        $region30: #{tpu_custom_call.1} parent=11 // pred_check_branch
          %245 = sbr.rel (%p243) target = $region32
        $region31: #{tpu_custom_call.1} parent=11 // pred_region
          _
        $region32: #{tpu_custom_call.1} parent=11 // pred_fallthru
          _
        // Predicated region
        $region33: #{tpu_custom_call.1} parent=11 // pred_check
          %p246 = pneg %p169
        $region34: #{tpu_custom_call.1} parent=11 // pred_check_branch
          %248 = sbr.rel (%p246) target = $region36
        $region35: #{tpu_custom_call.1} parent=11 // pred_region
          _
        $region36: #{tpu_custom_call.1} parent=11 // pred_fallthru
          _
        // Predicated region
        $region37: #{tpu_custom_call.1} parent=11 // pred_check
          %p249 = pneg %p190
        $region38: #{tpu_custom_call.1} parent=11 // pred_check_branch
          %251 = sbr.rel (%p249) target = $region40
        $region39: #{tpu_custom_call.1} parent=11 // pred_region
          _
        $region40: #{tpu_custom_call.1} parent=11 // pred_fallthru
          _
      $region12: #{tpu_custom_call.1} parent=5 // pred_fallthru
        _
      %p252 = scmp.lt.s32.totalorder %s17, 2
      // Predicated region
      $region41: #{tpu_custom_call.1} parent=5 // pred_check
        %p253 = pneg %p252
      $region42: #{tpu_custom_call.1} parent=5 // pred_check_branch
        %255 = sbr.rel (%p253) target = $region44
      $region43: #{tpu_custom_call.1} parent=5 // pred_region
        // Predicated region
        $region45: #{tpu_custom_call.1} parent=43 // pred_check
          %p256 = pneg %p37
        $region46: #{tpu_custom_call.1} parent=43 // pred_check_branch
          %258 = sbr.rel (%p256) target = $region48
        $region47: #{tpu_custom_call.1} parent=43 // pred_region
          %p259 = scmp.lt.s32.totalorder %s17, 1
          %s260 = scalar_select %p259, %s17, 1
          %s261 = smul.addr %s260, 2
          %s262 = smul.addr %s261, 4
          %s263 = scalar_lea.vmem %s0, %s262
        $region48: #{tpu_custom_call.1} parent=43 // pred_fallthru
          _
      $region44: #{tpu_custom_call.1} parent=5 // pred_fallthru
        _
      %p264 = scmp.le.s32.totalorder 1, %s17
      %p265 = scmp.lt.s32.totalorder %s17, 3
      %p266 = pnand %p264, %p265
      %p267 = pneg %p266
      // Predicated region
      $region49: #{tpu_custom_call.1} parent=5 // pred_check
        _
      $region50: #{tpu_custom_call.1} parent=5 // pred_check_branch
        %269 = sbr.rel (%p266) target = $region52
      $region51: #{tpu_custom_call.1} parent=5 // pred_region
        %s270 = ssub.s32 %s17, 1
        %p271 = scmp.lt.s32.totalorder %s22, 1
        %s272 = scalar_select %p271, %s22, 1
        %s273 = smul.addr %s272, 2
        %s274 = smul.addr %s273, 4
        %s275 = scalar_lea.vmem %s0, %s274
        %p276 = pneg %p43
        %p277 = pneg %p40
        %p278 = pneg %p64
        %p279 = pneg %p61
        %p280 = pneg %p85
        %p281 = pneg %p82
        %p282 = pneg %p106
        %p283 = pneg %p103
        %p284 = pneg %p127
        %p285 = pneg %p124
        %p286 = pneg %p148
        %p287 = pneg %p145
        %p288 = pneg %p169
        %p289 = pneg %p166
        %p290 = pneg %p190
        %p291 = pneg %p187
        %p292 = pneg %p216
        %p293 = pneg %p213
        %s294 = sand.u32 %s203, 1
        %s295 = scalar_lea.sflag [#allocation3], %s294
        %s296 = sand.u32 %s203, 1
        %s297 = smul.addr %s296, 8
        %s298 = scalar_lea.vmem [#allocation2], %s297
        %p299 = scmp.lt.s32.totalorder %s22, 1
        %s300 = scalar_select %p299, %s22, 1
        %s301 = smul.addr %s300, 2
        %s302 = smul.addr %s301, 4
        %s303 = scalar_lea.vmem %s0, %s302
        %v304 = vld [vmem:[%s303] sm:$0xff]
        %v305 = vld [vmem:[%s1] sm:$0xff]
        %v306 = vld [vmem:[%s1 + $0x8] sm:$0xff]
        %308 = vset.pattern.permute.xlu0 0
        %309 = vperm.xlu0 %308, %v305
        %v310 = vpop.permute.xlu0 %309
        %313 = vset.pattern.permute.xlu0 0
        %314 = vperm.xlu0 %313, %v306
        %v315 = vpop.permute.xlu0 %314
        %v318 = vlaneseq
        %v319 = vshrl.u32 %v318, 7
        %v320 = vsub.s32 0, %v319
        %v321 = vrot.slane %v304, %v320
        %v322 = vlaneseq
        %v323 = vshrl.u32 %v322, 7
        %v324 = vsub.s32 4, %v323
        %v325 = vrot.slane %v304, %v324
        %v328 = vlaneseq
        %v329 = vshrl.u32 %v328, 7
        %v330 = vsub.s32 0, %v329
        %v331 = vrot.slane %v321, %v330
        %v332 = vlaneseq
        %v333 = vshrl.u32 %v332, 7
        %v334 = vsub.s32 0, %v333
        %v335 = vrot.slane %v325, %v334
        %v336 = vmul.f32 %v310, %v331
        %v337 = vmul.f32 %v310, %v335
        %v338 = vmul.f32 %v315, %v331
        %v339 = vmul.f32 %v315, %v335
        %s340 = scalar_lea.vmem %s1, 16
        %v341 = vld [vmem:[%s340] sm:$0xff]
        %v342 = vld [vmem:[%s340 + $0x8] sm:$0xff]
        %344 = vset.pattern.permute.xlu0 0
        %345 = vperm.xlu0 %344, %v341
        %v346 = vpop.permute.xlu0 %345
        %349 = vset.pattern.permute.xlu0 0
        %350 = vperm.xlu0 %349, %v342
        %v351 = vpop.permute.xlu0 %350
        %v353 = vlaneseq
        %v354 = vshrl.u32 %v353, 7
        %v355 = vsub.s32 1, %v354
        %v356 = vrot.slane %v304, %v355
        %v357 = vlaneseq
        %v358 = vshrl.u32 %v357, 7
        %v359 = vsub.s32 5, %v358
        %v360 = vrot.slane %v304, %v359
        %v363 = vlaneseq
        %v364 = vshrl.u32 %v363, 7
        %v365 = vsub.s32 1, %v364
        %v366 = vrot.slane %v356, %v365
        %v367 = vlaneseq
        %v368 = vshrl.u32 %v367, 7
        %v369 = vsub.s32 1, %v368
        %v370 = vrot.slane %v360, %v369
        %v371 = vmul.f32 %v346, %v366
        %v372 = vmul.f32 %v346, %v370
        %v373 = vmul.f32 %v351, %v366
        %v374 = vmul.f32 %v351, %v370
        %v375 = vadd.f32 %v336, %v371
        %v376 = vadd.f32 %v337, %v372
        %v377 = vadd.f32 %v338, %v373
        %v378 = vadd.f32 %v339, %v374
        %s379 = scalar_lea.vmem %s1, 32
        %v380 = vld [vmem:[%s379] sm:$0xff]
        %v381 = vld [vmem:[%s379 + $0x8] sm:$0xff]
        %383 = vset.pattern.permute.xlu0 0
        %384 = vperm.xlu0 %383, %v380
        %v385 = vpop.permute.xlu0 %384
        %388 = vset.pattern.permute.xlu0 0
        %389 = vperm.xlu0 %388, %v381
        %v390 = vpop.permute.xlu0 %389
        %v392 = vlaneseq
        %v393 = vshrl.u32 %v392, 7
        %v394 = vsub.s32 2, %v393
        %v395 = vrot.slane %v304, %v394
        %v396 = vlaneseq
        %v397 = vshrl.u32 %v396, 7
        %v398 = vsub.s32 6, %v397
        %v399 = vrot.slane %v304, %v398
        %v402 = vlaneseq
        %v403 = vshrl.u32 %v402, 7
        %v404 = vsub.s32 2, %v403
        %v405 = vrot.slane %v395, %v404
        %v406 = vlaneseq
        %v407 = vshrl.u32 %v406, 7
        %v408 = vsub.s32 2, %v407
        %v409 = vrot.slane %v399, %v408
        %v410 = vmul.f32 %v385, %v405
        %v411 = vmul.f32 %v385, %v409
        %v412 = vmul.f32 %v390, %v405
        %v413 = vmul.f32 %v390, %v409
        %v414 = vadd.f32 %v375, %v410
        %v415 = vadd.f32 %v376, %v411
        %v416 = vadd.f32 %v377, %v412
        %v417 = vadd.f32 %v378, %v413
        %s418 = scalar_lea.vmem %s1, 48
        %v419 = vld [vmem:[%s418] sm:$0xff]
        %v420 = vld [vmem:[%s418 + $0x8] sm:$0xff]
        %422 = vset.pattern.permute.xlu0 0
        %423 = vperm.xlu0 %422, %v419
        %v424 = vpop.permute.xlu0 %423
        %427 = vset.pattern.permute.xlu0 0
        %428 = vperm.xlu0 %427, %v420
        %v429 = vpop.permute.xlu0 %428
        %v431 = vlaneseq
        %v432 = vshrl.u32 %v431, 7
        %v433 = vsub.s32 3, %v432
        %v434 = vrot.slane %v304, %v433
        %v435 = vlaneseq
        %v436 = vshrl.u32 %v435, 7
        %v437 = vsub.s32 7, %v436
        %v438 = vrot.slane %v304, %v437
        %v441 = vlaneseq
        %v442 = vshrl.u32 %v441, 7
        %v443 = vsub.s32 3, %v442
        %v444 = vrot.slane %v434, %v443
        %v445 = vlaneseq
        %v446 = vshrl.u32 %v445, 7
        %v447 = vsub.s32 3, %v446
        %v448 = vrot.slane %v438, %v447
        %v449 = vmul.f32 %v424, %v444
        %v450 = vmul.f32 %v424, %v448
        %v451 = vmul.f32 %v429, %v444
        %v452 = vmul.f32 %v429, %v448
        %v453 = vadd.f32 %v414, %v449
        %v454 = vadd.f32 %v415, %v450
        %v455 = vadd.f32 %v416, %v451
        %v456 = vadd.f32 %v417, %v452
        %v457 = vld [vmem:[%s2] sm:$0xff]
        %v458 = vld [vmem:[%s2 + $0x8] sm:$0xff]
        %460 = vset.pattern.permute.xlu0 0
        %461 = vperm.xlu0 %460, %v457
        %v462 = vpop.permute.xlu0 %461
        %465 = vset.pattern.permute.xlu0 0
        %466 = vperm.xlu0 %465, %v458
        %v467 = vpop.permute.xlu0 %466
        %v469 = vadd.f32 %v453, %v462
        %v470 = vadd.f32 %v454, %v462
        %v471 = vadd.f32 %v455, %v467
        %v472 = vadd.f32 %v456, %v467
        %v473 = vmax.f32 %v469, 0.0
        %v474 = vmax.f32 %v470, 0.0
        %v475 = vmax.f32 %v471, 0.0
        %v476 = vmax.f32 %v472, 0.0
        %v477 = vmin.f32 %v473, 6.0
        %v478 = vmin.f32 %v474, 6.0
        %v479 = vmin.f32 %v475, 6.0
        %v480 = vmin.f32 %v476, 6.0
        %481 = vrot.lane.b32.xlu0 %v477, 17
        %v482 = vpop.permute.xlu0 %481
        %483 = vrot.lane.b32.xlu0 %v479, 17
        %v484 = vpop.permute.xlu0 %483
        %485 = vrot.lane.b32.xlu0 %v478, 17
        %v486 = vpop.permute.xlu0 %485
        %487 = vrot.lane.b32.xlu0 %v480, 17
        %v488 = vpop.permute.xlu0 %487
        %v489 = vlaneseq
        %v490 = vand.u32 %v489, 127
        %vm491 = vcmp.lt.s32.totalorder %v490, 17
        %v492 = vsel %vm491, %v482, %v486
        %v493 = vsel %vm491, %v484, %v488
        %v494 = vsel %vm491, %v486, %v482
        %v495 = vsel %vm491, %v488, %v484
        %v496 = vld [vmem:[%s7] sm:$0x3]
        %v498 = vlaneseq
        %v499 = vshrl.u32 %v498, 7
        %v500 = vsub.s32 0, %v499
        %v501 = vrot.slane %v496, %v500
        %v502 = vlaneseq
        %v503 = vshrl.u32 %v502, 7
        %v504 = vsub.s32 1, %v503
        %v505 = vrot.slane %v496, %v504
        %v508 = vmul.f32 %v494, %v501
        %v509 = vmul.f32 %v492, %v505
        %v510 = vmul.f32 %v495, %v501
        %v511 = vmul.f32 %v493, %v505
        %v512 = vld [vmem:[%s3] sm:$0xff]
        %v513 = vld [vmem:[%s3 + $0x8] sm:$0xff]
        %515 = vset.pattern.permute.xlu0 0
        %516 = vperm.xlu0 %515, %v512
        %v517 = vpop.permute.xlu0 %516
        %520 = vset.pattern.permute.xlu0 0
        %521 = vperm.xlu0 %520, %v513
        %v522 = vpop.permute.xlu0 %521
        %v524 = vmul.f32 %v508, %v517
        %v525 = vmul.f32 %v509, %v517
        %v526 = vmul.f32 %v510, %v522
        %v527 = vmul.f32 %v511, %v522
        %v528 = vadd.f32 %v524, 0.0
        %v529 = vadd.f32 %v525, 0.0
        %v530 = vadd.f32 %v526, 0.0
        %v531 = vadd.f32 %v527, 0.0
        %532 = vrot.lane.b32.xlu0 %v477, 16
        %v533 = vpop.permute.xlu0 %532
        %534 = vrot.lane.b32.xlu0 %v479, 16
        %v535 = vpop.permute.xlu0 %534
        %536 = vrot.lane.b32.xlu0 %v478, 16
        %v537 = vpop.permute.xlu0 %536
        %538 = vrot.lane.b32.xlu0 %v480, 16
        %v539 = vpop.permute.xlu0 %538
        %vm540 = vcmp.lt.s32.totalorder %v490, 16
        %v541 = vsel %vm540, %v533, %v537
        %v542 = vsel %vm540, %v535, %v539
        %v543 = vsel %vm540, %v537, %v533
        %v544 = vsel %vm540, %v539, %v535
        %s545 = scalar_lea.vmem %s7, 2
        %v546 = vld [vmem:[%s545] sm:$0x3]
        %v548 = vlaneseq
        %v549 = vshrl.u32 %v548, 7
        %v550 = vsub.s32 0, %v549
        %v551 = vrot.slane %v546, %v550
        %v552 = vlaneseq
        %v553 = vshrl.u32 %v552, 7
        %v554 = vsub.s32 1, %v553
        %v555 = vrot.slane %v546, %v554
        %v558 = vmul.f32 %v543, %v551
        %v559 = vmul.f32 %v541, %v555
        %v560 = vmul.f32 %v544, %v551
        %v561 = vmul.f32 %v542, %v555
        %s562 = scalar_lea.vmem %s3, 16
        %v563 = vld [vmem:[%s562] sm:$0xff]
        %v564 = vld [vmem:[%s562 + $0x8] sm:$0xff]
        %566 = vset.pattern.permute.xlu0 0
        %567 = vperm.xlu0 %566, %v563
        %v568 = vpop.permute.xlu0 %567
        %571 = vset.pattern.permute.xlu0 0
        %572 = vperm.xlu0 %571, %v564
        %v573 = vpop.permute.xlu0 %572
        %v575 = vmul.f32 %v558, %v568
        %v576 = vmul.f32 %v559, %v568
        %v577 = vmul.f32 %v560, %v573
        %v578 = vmul.f32 %v561, %v573
        %v579 = vadd.f32 %v528, %v575
        %v580 = vadd.f32 %v529, %v576
        %v581 = vadd.f32 %v530, %v577
        %v582 = vadd.f32 %v531, %v578
        %583 = vrot.lane.b32.xlu0 %v477, 15
        %v584 = vpop.permute.xlu0 %583
        %585 = vrot.lane.b32.xlu0 %v479, 15
        %v586 = vpop.permute.xlu0 %585
        %587 = vrot.lane.b32.xlu0 %v478, 15
        %v588 = vpop.permute.xlu0 %587
        %589 = vrot.lane.b32.xlu0 %v480, 15
        %v590 = vpop.permute.xlu0 %589
        %vm591 = vcmp.lt.s32.totalorder %v490, 15
        %v592 = vsel %vm591, %v584, %v588
        %v593 = vsel %vm591, %v586, %v590
        %v594 = vsel %vm591, %v588, %v584
        %v595 = vsel %vm591, %v590, %v586
        %s596 = scalar_lea.vmem %s7, 4
        %v597 = vld [vmem:[%s596] sm:$0x3]
        %v599 = vlaneseq
        %v600 = vshrl.u32 %v599, 7
        %v601 = vsub.s32 0, %v600
        %v602 = vrot.slane %v597, %v601
        %v603 = vlaneseq
        %v604 = vshrl.u32 %v603, 7
        %v605 = vsub.s32 1, %v604
        %v606 = vrot.slane %v597, %v605
        %v609 = vmul.f32 %v594, %v602
        %v610 = vmul.f32 %v592, %v606
        %v611 = vmul.f32 %v595, %v602
        %v612 = vmul.f32 %v593, %v606
        %s613 = scalar_lea.vmem %s3, 32
        %v614 = vld [vmem:[%s613] sm:$0xff]
        %v615 = vld [vmem:[%s613 + $0x8] sm:$0xff]
        %617 = vset.pattern.permute.xlu0 0
        %618 = vperm.xlu0 %617, %v614
        %v619 = vpop.permute.xlu0 %618
        %622 = vset.pattern.permute.xlu0 0
        %623 = vperm.xlu0 %622, %v615
        %v624 = vpop.permute.xlu0 %623
        %v626 = vmul.f32 %v609, %v619
        %v627 = vmul.f32 %v610, %v619
        %v628 = vmul.f32 %v611, %v624
        %v629 = vmul.f32 %v612, %v624
        %v630 = vadd.f32 %v579, %v626
        %v631 = vadd.f32 %v580, %v627
        %v632 = vadd.f32 %v581, %v628
        %v633 = vadd.f32 %v582, %v629
        %634 = vrot.lane.b32.xlu0 %v477, 1
        %v635 = vpop.permute.xlu0 %634
        %636 = vrot.lane.b32.xlu0 %v479, 1
        %v637 = vpop.permute.xlu0 %636
        %638 = vrot.lane.b32.xlu0 %v478, 1
        %v639 = vpop.permute.xlu0 %638
        %640 = vrot.lane.b32.xlu0 %v480, 1
        %v641 = vpop.permute.xlu0 %640
        %vm642 = vcmp.lt.s32.totalorder %v490, 1
        %v643 = vsel %vm642, %v635, %v639
        %v644 = vsel %vm642, %v637, %v641
        %v645 = vsel %vm642, %v639, %v635
        %v646 = vsel %vm642, %v641, %v637
        %s647 = scalar_lea.vmem %s7, 6
        %v648 = vld [vmem:[%s647] sm:$0x3]
        %v650 = vlaneseq
        %v651 = vshrl.u32 %v650, 7
        %v652 = vsub.s32 0, %v651
        %v653 = vrot.slane %v648, %v652
        %v654 = vlaneseq
        %v655 = vshrl.u32 %v654, 7
        %v656 = vsub.s32 1, %v655
        %v657 = vrot.slane %v648, %v656
        %v660 = vmul.f32 %v645, %v653
        %v661 = vmul.f32 %v643, %v657
        %v662 = vmul.f32 %v646, %v653
        %v663 = vmul.f32 %v644, %v657
        %s664 = scalar_lea.vmem %s3, 48
        %v665 = vld [vmem:[%s664] sm:$0xff]
        %v666 = vld [vmem:[%s664 + $0x8] sm:$0xff]
        %668 = vset.pattern.permute.xlu0 0
        %669 = vperm.xlu0 %668, %v665
        %v670 = vpop.permute.xlu0 %669
        %673 = vset.pattern.permute.xlu0 0
        %674 = vperm.xlu0 %673, %v666
        %v675 = vpop.permute.xlu0 %674
        %v677 = vmul.f32 %v660, %v670
        %v678 = vmul.f32 %v661, %v670
        %v679 = vmul.f32 %v662, %v675
        %v680 = vmul.f32 %v663, %v675
        %v681 = vadd.f32 %v630, %v677
        %v682 = vadd.f32 %v631, %v678
        %v683 = vadd.f32 %v632, %v679
        %v684 = vadd.f32 %v633, %v680
        %s685 = scalar_lea.vmem %s3, 64
        %v686 = vld [vmem:[%s685] sm:$0xff]
        %v687 = vld [vmem:[%s685 + $0x8] sm:$0xff]
        %689 = vset.pattern.permute.xlu0 0
        %690 = vperm.xlu0 %689, %v686
        %v691 = vpop.permute.xlu0 %690
        %694 = vset.pattern.permute.xlu0 0
        %695 = vperm.xlu0 %694, %v687
        %v696 = vpop.permute.xlu0 %695
        %v698 = vmul.f32 %v477, %v691
        %v699 = vmul.f32 %v478, %v691
        %v700 = vmul.f32 %v479, %v696
        %v701 = vmul.f32 %v480, %v696
        %v702 = vadd.f32 %v681, %v698
        %v703 = vadd.f32 %v682, %v699
        %v704 = vadd.f32 %v683, %v700
        %v705 = vadd.f32 %v684, %v701
        %706 = vrot.lane.b32.xlu0 %v477, 127
        %v707 = vpop.permute.xlu0 %706
        %708 = vrot.lane.b32.xlu0 %v479, 127
        %v709 = vpop.permute.xlu0 %708
        %710 = vrot.lane.b32.xlu0 %v478, 127
        %v711 = vpop.permute.xlu0 %710
        %712 = vrot.lane.b32.xlu0 %v480, 127
        %v713 = vpop.permute.xlu0 %712
        %vm714 = vcmp.lt.s32.totalorder %v490, 127
        %v715 = vsel %vm714, %v707, %v711
        %v716 = vsel %vm714, %v709, %v713
        %v717 = vsel %vm714, %v711, %v707
        %v718 = vsel %vm714, %v713, %v709
        %s719 = scalar_lea.vmem %s7, 10
        %v720 = vld [vmem:[%s719] sm:$0x3]
        %v722 = vlaneseq
        %v723 = vshrl.u32 %v722, 7
        %v724 = vsub.s32 0, %v723
        %v725 = vrot.slane %v720, %v724
        %v726 = vlaneseq
        %v727 = vshrl.u32 %v726, 7
        %v728 = vsub.s32 1, %v727
        %v729 = vrot.slane %v720, %v728
        %v732 = vmul.f32 %v715, %v725
        %v733 = vmul.f32 %v717, %v729
        %v734 = vmul.f32 %v716, %v725
        %v735 = vmul.f32 %v718, %v729
        %s736 = scalar_lea.vmem %s3, 80
        %v737 = vld [vmem:[%s736] sm:$0xff]
        %v738 = vld [vmem:[%s736 + $0x8] sm:$0xff]
        %740 = vset.pattern.permute.xlu0 0
        %741 = vperm.xlu0 %740, %v737
        %v742 = vpop.permute.xlu0 %741
        %745 = vset.pattern.permute.xlu0 0
        %746 = vperm.xlu0 %745, %v738
        %v747 = vpop.permute.xlu0 %746
        %v749 = vmul.f32 %v732, %v742
        %v750 = vmul.f32 %v733, %v742
        %v751 = vmul.f32 %v734, %v747
        %v752 = vmul.f32 %v735, %v747
        %v753 = vadd.f32 %v702, %v749
        %v754 = vadd.f32 %v703, %v750
        %v755 = vadd.f32 %v704, %v751
        %v756 = vadd.f32 %v705, %v752
        %757 = vrot.lane.b32.xlu0 %v477, 113
        %v758 = vpop.permute.xlu0 %757
        %759 = vrot.lane.b32.xlu0 %v479, 113
        %v760 = vpop.permute.xlu0 %759
        %761 = vrot.lane.b32.xlu0 %v478, 113
        %v762 = vpop.permute.xlu0 %761
        %763 = vrot.lane.b32.xlu0 %v480, 113
        %v764 = vpop.permute.xlu0 %763
        %vm765 = vcmp.lt.s32.totalorder %v490, 113
        %v766 = vsel %vm765, %v758, %v762
        %v767 = vsel %vm765, %v760, %v764
        %v768 = vsel %vm765, %v762, %v758
        %v769 = vsel %vm765, %v764, %v760
        %s770 = scalar_lea.vmem %s7, 12
        %v771 = vld [vmem:[%s770] sm:$0x3]
        %v773 = vlaneseq
        %v774 = vshrl.u32 %v773, 7
        %v775 = vsub.s32 0, %v774
        %v776 = vrot.slane %v771, %v775
        %v777 = vlaneseq
        %v778 = vshrl.u32 %v777, 7
        %v779 = vsub.s32 1, %v778
        %v780 = vrot.slane %v771, %v779
        %v783 = vmul.f32 %v766, %v776
        %v784 = vmul.f32 %v768, %v780
        %v785 = vmul.f32 %v767, %v776
        %v786 = vmul.f32 %v769, %v780
        %s787 = scalar_lea.vmem %s3, 96
        %v788 = vld [vmem:[%s787] sm:$0xff]
        %v789 = vld [vmem:[%s787 + $0x8] sm:$0xff]
        %791 = vset.pattern.permute.xlu0 0
        %792 = vperm.xlu0 %791, %v788
        %v793 = vpop.permute.xlu0 %792
        %796 = vset.pattern.permute.xlu0 0
        %797 = vperm.xlu0 %796, %v789
        %v798 = vpop.permute.xlu0 %797
        %v800 = vmul.f32 %v783, %v793
        %v801 = vmul.f32 %v784, %v793
        %v802 = vmul.f32 %v785, %v798
        %v803 = vmul.f32 %v786, %v798
        %v804 = vadd.f32 %v753, %v800
        %v805 = vadd.f32 %v754, %v801
        %v806 = vadd.f32 %v755, %v802
        %v807 = vadd.f32 %v756, %v803
        %808 = vrot.lane.b32.xlu0 %v477, 112
        %v809 = vpop.permute.xlu0 %808
        %810 = vrot.lane.b32.xlu0 %v479, 112
        %v811 = vpop.permute.xlu0 %810
        %812 = vrot.lane.b32.xlu0 %v478, 112
        %v813 = vpop.permute.xlu0 %812
        %814 = vrot.lane.b32.xlu0 %v480, 112
        %v815 = vpop.permute.xlu0 %814
        %vm816 = vcmp.lt.s32.totalorder %v490, 112
        %v817 = vsel %vm816, %v809, %v813
        %v818 = vsel %vm816, %v811, %v815
        %v819 = vsel %vm816, %v813, %v809
        %v820 = vsel %vm816, %v815, %v811
        %s821 = scalar_lea.vmem %s7, 14
        %v822 = vld [vmem:[%s821] sm:$0x3]
        %v824 = vlaneseq
        %v825 = vshrl.u32 %v824, 7
        %v826 = vsub.s32 0, %v825
        %v827 = vrot.slane %v822, %v826
        %v828 = vlaneseq
        %v829 = vshrl.u32 %v828, 7
        %v830 = vsub.s32 1, %v829
        %v831 = vrot.slane %v822, %v830
        %v834 = vmul.f32 %v817, %v827
        %v835 = vmul.f32 %v819, %v831
        %v836 = vmul.f32 %v818, %v827
        %v837 = vmul.f32 %v820, %v831
        %s838 = scalar_lea.vmem %s3, 112
        %v839 = vld [vmem:[%s838] sm:$0xff]
        %v840 = vld [vmem:[%s838 + $0x8] sm:$0xff]
        %842 = vset.pattern.permute.xlu0 0
        %843 = vperm.xlu0 %842, %v839
        %v844 = vpop.permute.xlu0 %843
        %847 = vset.pattern.permute.xlu0 0
        %848 = vperm.xlu0 %847, %v840
        %v849 = vpop.permute.xlu0 %848
        %v851 = vmul.f32 %v834, %v844
        %v852 = vmul.f32 %v835, %v844
        %v853 = vmul.f32 %v836, %v849
        %v854 = vmul.f32 %v837, %v849
        %v855 = vadd.f32 %v804, %v851
        %v856 = vadd.f32 %v805, %v852
        %v857 = vadd.f32 %v806, %v853
        %v858 = vadd.f32 %v807, %v854
        %859 = vrot.lane.b32.xlu0 %v477, 111
        %v860 = vpop.permute.xlu0 %859
        %861 = vrot.lane.b32.xlu0 %v479, 111
        %v862 = vpop.permute.xlu0 %861
        %863 = vrot.lane.b32.xlu0 %v478, 111
        %v864 = vpop.permute.xlu0 %863
        %865 = vrot.lane.b32.xlu0 %v480, 111
        %v866 = vpop.permute.xlu0 %865
        %vm867 = vcmp.lt.s32.totalorder %v490, 111
        %v868 = vsel %vm867, %v860, %v864
        %v869 = vsel %vm867, %v862, %v866
        %v870 = vsel %vm867, %v864, %v860
        %v871 = vsel %vm867, %v866, %v862
        %s872 = scalar_lea.vmem %s7, 16
        %v873 = vld [vmem:[%s872] sm:$0x3]
        %v875 = vlaneseq
        %v876 = vshrl.u32 %v875, 7
        %v877 = vsub.s32 0, %v876
        %v878 = vrot.slane %v873, %v877
        %v879 = vlaneseq
        %v880 = vshrl.u32 %v879, 7
        %v881 = vsub.s32 1, %v880
        %v882 = vrot.slane %v873, %v881
        %v885 = vmul.f32 %v868, %v878
        %v886 = vmul.f32 %v870, %v882
        %v887 = vmul.f32 %v869, %v878
        %v888 = vmul.f32 %v871, %v882
        %s889 = scalar_lea.vmem %s3, 128
        %v890 = vld [vmem:[%s889] sm:$0xff]
        %v891 = vld [vmem:[%s889 + $0x8] sm:$0xff]
        %893 = vset.pattern.permute.xlu0 0
        %894 = vperm.xlu0 %893, %v890
        %v895 = vpop.permute.xlu0 %894
        %898 = vset.pattern.permute.xlu0 0
        %899 = vperm.xlu0 %898, %v891
        %v900 = vpop.permute.xlu0 %899
        %v902 = vmul.f32 %v885, %v895
        %v903 = vmul.f32 %v886, %v895
        %v904 = vmul.f32 %v887, %v900
        %v905 = vmul.f32 %v888, %v900
        %v906 = vadd.f32 %v855, %v902
        %v907 = vadd.f32 %v856, %v903
        %v908 = vadd.f32 %v857, %v904
        %v909 = vadd.f32 %v858, %v905
        %v910 = vld [vmem:[%s4] sm:$0xff]
        %v911 = vld [vmem:[%s4 + $0x8] sm:$0xff]
        %913 = vset.pattern.permute.xlu0 0
        %914 = vperm.xlu0 %913, %v910
        %v915 = vpop.permute.xlu0 %914
        %918 = vset.pattern.permute.xlu0 0
        %919 = vperm.xlu0 %918, %v911
        %v920 = vpop.permute.xlu0 %919
        %v922 = vadd.f32 %v906, %v915
        %v923 = vadd.f32 %v907, %v915
        %v924 = vadd.f32 %v908, %v920
        %v925 = vadd.f32 %v909, %v920
        %v926 = vmax.f32 %v922, 0.0
        %v927 = vmax.f32 %v923, 0.0
        %v928 = vmax.f32 %v924, 0.0
        %v929 = vmax.f32 %v925, 0.0
        %v930 = vmin.f32 %v926, 6.0
        %v931 = vmin.f32 %v927, 6.0
        %v932 = vmin.f32 %v928, 6.0
        %v933 = vmin.f32 %v929, 6.0
        %v934 = vld [vmem:[%s5] sm:$0xf]
        %936 = vset.pattern.permute.xlu0 0
        %937 = vperm.xlu0 %936, %v934
        %v938 = vpop.permute.xlu0 %937
        %v940 = vlaneseq
        %v941 = vshrl.u32 %v940, 7
        %v942 = vsub.s32 0, %v941
        %v943 = vrot.slane %v930, %v942
        %v944 = vlaneseq
        %v945 = vshrl.u32 %v944, 7
        %v946 = vsub.s32 0, %v945
        %v947 = vrot.slane %v931, %v946
        %v948 = vmul.f32 %v938, %v943
        %v949 = vmul.f32 %v938, %v947
        %s950 = scalar_lea.vmem %s5, 4
        %v951 = vld [vmem:[%s950] sm:$0xf]
        %953 = vset.pattern.permute.xlu0 0
        %954 = vperm.xlu0 %953, %v951
        %v955 = vpop.permute.xlu0 %954
        %v957 = vlaneseq
        %v958 = vshrl.u32 %v957, 7
        %v959 = vsub.s32 1, %v958
        %v960 = vrot.slane %v930, %v959
        %v961 = vlaneseq
        %v962 = vshrl.u32 %v961, 7
        %v963 = vsub.s32 1, %v962
        %v964 = vrot.slane %v931, %v963
        %v965 = vmul.f32 %v955, %v960
        %v966 = vmul.f32 %v955, %v964
        %v967 = vadd.f32 %v948, %v965
        %v968 = vadd.f32 %v949, %v966
        %s969 = scalar_lea.vmem %s5, 8
        %v970 = vld [vmem:[%s969] sm:$0xf]
        %972 = vset.pattern.permute.xlu0 0
        %973 = vperm.xlu0 %972, %v970
        %v974 = vpop.permute.xlu0 %973
        %v976 = vlaneseq
        %v977 = vshrl.u32 %v976, 7
        %v978 = vsub.s32 2, %v977
        %v979 = vrot.slane %v930, %v978
        %v980 = vlaneseq
        %v981 = vshrl.u32 %v980, 7
        %v982 = vsub.s32 2, %v981
        %v983 = vrot.slane %v931, %v982
        %v984 = vmul.f32 %v974, %v979
        %v985 = vmul.f32 %v974, %v983
        %v986 = vadd.f32 %v967, %v984
        %v987 = vadd.f32 %v968, %v985
        %s988 = scalar_lea.vmem %s5, 12
        %v989 = vld [vmem:[%s988] sm:$0xf]
        %991 = vset.pattern.permute.xlu0 0
        %992 = vperm.xlu0 %991, %v989
        %v993 = vpop.permute.xlu0 %992
        %v995 = vlaneseq
        %v996 = vshrl.u32 %v995, 7
        %v997 = vsub.s32 3, %v996
        %v998 = vrot.slane %v930, %v997
        %v999 = vlaneseq
        %v1000 = vshrl.u32 %v999, 7
        %v1001 = vsub.s32 3, %v1000
        %v1002 = vrot.slane %v931, %v1001
        %v1003 = vmul.f32 %v993, %v998
        %v1004 = vmul.f32 %v993, %v1002
        %v1005 = vadd.f32 %v986, %v1003
        %v1006 = vadd.f32 %v987, %v1004
        %s1007 = scalar_lea.vmem %s5, 16
        %v1008 = vld [vmem:[%s1007] sm:$0xf]
        %1010 = vset.pattern.permute.xlu0 0
        %1011 = vperm.xlu0 %1010, %v1008
        %v1012 = vpop.permute.xlu0 %1011
        %v1014 = vlaneseq
        %v1015 = vshrl.u32 %v1014, 7
        %v1016 = vsub.s32 4, %v1015
        %v1017 = vrot.slane %v930, %v1016
        %v1018 = vlaneseq
        %v1019 = vshrl.u32 %v1018, 7
        %v1020 = vsub.s32 4, %v1019
        %v1021 = vrot.slane %v931, %v1020
        %v1022 = vmul.f32 %v1012, %v1017
        %v1023 = vmul.f32 %v1012, %v1021
        %v1024 = vadd.f32 %v1005, %v1022
        %v1025 = vadd.f32 %v1006, %v1023
        %s1026 = scalar_lea.vmem %s5, 20
        %v1027 = vld [vmem:[%s1026] sm:$0xf]
        %1029 = vset.pattern.permute.xlu0 0
        %1030 = vperm.xlu0 %1029, %v1027
        %v1031 = vpop.permute.xlu0 %1030
        %v1033 = vlaneseq
        %v1034 = vshrl.u32 %v1033, 7
        %v1035 = vsub.s32 5, %v1034
        %v1036 = vrot.slane %v930, %v1035
        %v1037 = vlaneseq
        %v1038 = vshrl.u32 %v1037, 7
        %v1039 = vsub.s32 5, %v1038
        %v1040 = vrot.slane %v931, %v1039
        %v1041 = vmul.f32 %v1031, %v1036
        %v1042 = vmul.f32 %v1031, %v1040
        %v1043 = vadd.f32 %v1024, %v1041
        %v1044 = vadd.f32 %v1025, %v1042
        %s1045 = scalar_lea.vmem %s5, 24
        %v1046 = vld [vmem:[%s1045] sm:$0xf]
        %1048 = vset.pattern.permute.xlu0 0
        %1049 = vperm.xlu0 %1048, %v1046
        %v1050 = vpop.permute.xlu0 %1049
        %v1052 = vlaneseq
        %v1053 = vshrl.u32 %v1052, 7
        %v1054 = vsub.s32 6, %v1053
        %v1055 = vrot.slane %v930, %v1054
        %v1056 = vlaneseq
        %v1057 = vshrl.u32 %v1056, 7
        %v1058 = vsub.s32 6, %v1057
        %v1059 = vrot.slane %v931, %v1058
        %v1060 = vmul.f32 %v1050, %v1055
        %v1061 = vmul.f32 %v1050, %v1059
        %v1062 = vadd.f32 %v1043, %v1060
        %v1063 = vadd.f32 %v1044, %v1061
        %s1064 = scalar_lea.vmem %s5, 28
        %v1065 = vld [vmem:[%s1064] sm:$0xf]
        %1067 = vset.pattern.permute.xlu0 0
        %1068 = vperm.xlu0 %1067, %v1065
        %v1069 = vpop.permute.xlu0 %1068
        %v1071 = vlaneseq
        %v1072 = vshrl.u32 %v1071, 7
        %v1073 = vsub.s32 7, %v1072
        %v1074 = vrot.slane %v930, %v1073
        %v1075 = vlaneseq
        %v1076 = vshrl.u32 %v1075, 7
        %v1077 = vsub.s32 7, %v1076
        %v1078 = vrot.slane %v931, %v1077
        %v1079 = vmul.f32 %v1069, %v1074
        %v1080 = vmul.f32 %v1069, %v1078
        %v1081 = vadd.f32 %v1062, %v1079
        %v1082 = vadd.f32 %v1063, %v1080
        %s1083 = scalar_lea.vmem %s5, 32
        %v1084 = vld [vmem:[%s1083] sm:$0xf]
        %1086 = vset.pattern.permute.xlu0 0
        %1087 = vperm.xlu0 %1086, %v1084
        %v1088 = vpop.permute.xlu0 %1087
        %v1090 = vlaneseq
        %v1091 = vshrl.u32 %v1090, 7
        %v1092 = vsub.s32 0, %v1091
        %v1093 = vrot.slane %v932, %v1092
        %v1094 = vlaneseq
        %v1095 = vshrl.u32 %v1094, 7
        %v1096 = vsub.s32 0, %v1095
        %v1097 = vrot.slane %v933, %v1096
        %v1098 = vmul.f32 %v1088, %v1093
        %v1099 = vmul.f32 %v1088, %v1097
        %v1100 = vadd.f32 %v1081, %v1098
        %v1101 = vadd.f32 %v1082, %v1099
        %s1102 = scalar_lea.vmem %s5, 36
        %v1103 = vld [vmem:[%s1102] sm:$0xf]
        %1105 = vset.pattern.permute.xlu0 0
        %1106 = vperm.xlu0 %1105, %v1103
        %v1107 = vpop.permute.xlu0 %1106
        %v1109 = vlaneseq
        %v1110 = vshrl.u32 %v1109, 7
        %v1111 = vsub.s32 1, %v1110
        %v1112 = vrot.slane %v932, %v1111
        %v1113 = vlaneseq
        %v1114 = vshrl.u32 %v1113, 7
        %v1115 = vsub.s32 1, %v1114
        %v1116 = vrot.slane %v933, %v1115
        %v1117 = vmul.f32 %v1107, %v1112
        %v1118 = vmul.f32 %v1107, %v1116
        %v1119 = vadd.f32 %v1100, %v1117
        %v1120 = vadd.f32 %v1101, %v1118
        %s1121 = scalar_lea.vmem %s5, 40
        %v1122 = vld [vmem:[%s1121] sm:$0xf]
        %1124 = vset.pattern.permute.xlu0 0
        %1125 = vperm.xlu0 %1124, %v1122
        %v1126 = vpop.permute.xlu0 %1125
        %v1128 = vlaneseq
        %v1129 = vshrl.u32 %v1128, 7
        %v1130 = vsub.s32 2, %v1129
        %v1131 = vrot.slane %v932, %v1130
        %v1132 = vlaneseq
        %v1133 = vshrl.u32 %v1132, 7
        %v1134 = vsub.s32 2, %v1133
        %v1135 = vrot.slane %v933, %v1134
        %v1136 = vmul.f32 %v1126, %v1131
        %v1137 = vmul.f32 %v1126, %v1135
        %v1138 = vadd.f32 %v1119, %v1136
        %v1139 = vadd.f32 %v1120, %v1137
        %s1140 = scalar_lea.vmem %s5, 44
        %v1141 = vld [vmem:[%s1140] sm:$0xf]
        %1143 = vset.pattern.permute.xlu0 0
        %1144 = vperm.xlu0 %1143, %v1141
        %v1145 = vpop.permute.xlu0 %1144
        %v1147 = vlaneseq
        %v1148 = vshrl.u32 %v1147, 7
        %v1149 = vsub.s32 3, %v1148
        %v1150 = vrot.slane %v932, %v1149
        %v1151 = vlaneseq
        %v1152 = vshrl.u32 %v1151, 7
        %v1153 = vsub.s32 3, %v1152
        %v1154 = vrot.slane %v933, %v1153
        %v1155 = vmul.f32 %v1145, %v1150
        %v1156 = vmul.f32 %v1145, %v1154
        %v1157 = vadd.f32 %v1138, %v1155
        %v1158 = vadd.f32 %v1139, %v1156
        %s1159 = scalar_lea.vmem %s5, 48
        %v1160 = vld [vmem:[%s1159] sm:$0xf]
        %1162 = vset.pattern.permute.xlu0 0
        %1163 = vperm.xlu0 %1162, %v1160
        %v1164 = vpop.permute.xlu0 %1163
        %v1166 = vlaneseq
        %v1167 = vshrl.u32 %v1166, 7
        %v1168 = vsub.s32 4, %v1167
        %v1169 = vrot.slane %v932, %v1168
        %v1170 = vlaneseq
        %v1171 = vshrl.u32 %v1170, 7
        %v1172 = vsub.s32 4, %v1171
        %v1173 = vrot.slane %v933, %v1172
        %v1174 = vmul.f32 %v1164, %v1169
        %v1175 = vmul.f32 %v1164, %v1173
        %v1176 = vadd.f32 %v1157, %v1174
        %v1177 = vadd.f32 %v1158, %v1175
        %s1178 = scalar_lea.vmem %s5, 52
        %v1179 = vld [vmem:[%s1178] sm:$0xf]
        %1181 = vset.pattern.permute.xlu0 0
        %1182 = vperm.xlu0 %1181, %v1179
        %v1183 = vpop.permute.xlu0 %1182
        %v1185 = vlaneseq
        %v1186 = vshrl.u32 %v1185, 7
        %v1187 = vsub.s32 5, %v1186
        %v1188 = vrot.slane %v932, %v1187
        %v1189 = vlaneseq
        %v1190 = vshrl.u32 %v1189, 7
        %v1191 = vsub.s32 5, %v1190
        %v1192 = vrot.slane %v933, %v1191
        %v1193 = vmul.f32 %v1183, %v1188
        %v1194 = vmul.f32 %v1183, %v1192
        %v1195 = vadd.f32 %v1176, %v1193
        %v1196 = vadd.f32 %v1177, %v1194
        %s1197 = scalar_lea.vmem %s5, 56
        %v1198 = vld [vmem:[%s1197] sm:$0xf]
        %1200 = vset.pattern.permute.xlu0 0
        %1201 = vperm.xlu0 %1200, %v1198
        %v1202 = vpop.permute.xlu0 %1201
        %v1204 = vlaneseq
        %v1205 = vshrl.u32 %v1204, 7
        %v1206 = vsub.s32 6, %v1205
        %v1207 = vrot.slane %v932, %v1206
        %v1208 = vlaneseq
        %v1209 = vshrl.u32 %v1208, 7
        %v1210 = vsub.s32 6, %v1209
        %v1211 = vrot.slane %v933, %v1210
        %v1212 = vmul.f32 %v1202, %v1207
        %v1213 = vmul.f32 %v1202, %v1211
        %v1214 = vadd.f32 %v1195, %v1212
        %v1215 = vadd.f32 %v1196, %v1213
        %s1216 = scalar_lea.vmem %s5, 60
        %v1217 = vld [vmem:[%s1216] sm:$0xf]
        %1219 = vset.pattern.permute.xlu0 0
        %1220 = vperm.xlu0 %1219, %v1217
        %v1221 = vpop.permute.xlu0 %1220
        %v1223 = vlaneseq
        %v1224 = vshrl.u32 %v1223, 7
        %v1225 = vsub.s32 7, %v1224
        %v1226 = vrot.slane %v932, %v1225
        %v1227 = vlaneseq
        %v1228 = vshrl.u32 %v1227, 7
        %v1229 = vsub.s32 7, %v1228
        %v1230 = vrot.slane %v933, %v1229
        %v1231 = vmul.f32 %v1221, %v1226
        %v1232 = vmul.f32 %v1221, %v1230
        %v1233 = vadd.f32 %v1214, %v1231
        %v1234 = vadd.f32 %v1215, %v1232
        %v1235 = vld [vmem:[%s6] sm:$0xf]
        %1237 = vset.pattern.permute.xlu0 0
        %1238 = vperm.xlu0 %1237, %v1235
        %v1239 = vpop.permute.xlu0 %1238
        %v1241 = vadd.f32 %v1233, %v1239
        %v1242 = vadd.f32 %v1234, %v1239
        %v1243 = vcombine.high %v304, %v304
        %v1245 = vadd.f32 %v1241, %v304
        %v1246 = vadd.f32 %v1242, %v1243
        %v1249 = vcombine.low %v1245, %v1246
        %1251 = vst [vmem:[%s298] sm:$0xff] %v1249
        %s1252 = sand.u32 %s203, 1
        %s1253 = scalar_lea.sflag [#allocation3], %s1252
        %s1254 = sand.u32 %s203, 1
        %s1255 = smul.addr %s1254, 8
        %s1256 = scalar_lea.vmem [#allocation2], %s1255
        // Predicated region
        $region53: #{tpu_custom_call.1} parent=51 // pred_check
          %p1257 = pneg %p213
        $region54: #{tpu_custom_call.1} parent=51 // pred_check_branch
          %1259 = sbr.rel (%p1257) target = $region56
        $region55: #{tpu_custom_call.1} parent=51 // pred_region
          %s1261 = ssub.s32 128, 128
          %1262 = vsyncadd %s1253, %s1261
          %s1263 = smul.addr %s22, 2
          %s1264 = smul.addr %s1263, 64
          %s1265 = scalar_lea.hbm %s8, %s1264
          %s1267 = sshll.u32 %s1256, 4
          %s1268 = int_to_ptr.vmem [resolvable:$true] %s1267
          %1270 = dma.vmem_to_hbm [thread:$0]  %s1268, 128, %s1265, %s1253
        $region56: #{tpu_custom_call.1} parent=51 // pred_fallthru
          _
      $region52: #{tpu_custom_call.1} parent=5 // pred_fallthru
        _
      %p1271 = scmp.le.s32.totalorder 2, %s17
      // Predicated region
      $region57: #{tpu_custom_call.1} parent=5 // pred_check
        %p1272 = pneg %p1271
      $region58: #{tpu_custom_call.1} parent=5 // pred_check_branch
        %1274 = sbr.rel (%p1272) target = $region60
      $region59: #{tpu_custom_call.1} parent=5 // pred_region
        %s1275 = ssub.s32 %s17, 2
        // Predicated region
        $region61: #{tpu_custom_call.1} parent=59 // pred_check
          %p1276 = pneg %p219
        $region62: #{tpu_custom_call.1} parent=59 // pred_check_branch
          %1278 = sbr.rel (%p1276) target = $region64
        $region63: #{tpu_custom_call.1} parent=59 // pred_region
          %s1279 = sand.u32 %s204, 1
          %s1280 = scalar_lea.sflag [#allocation3], %s1279
          %s1281 = sand.u32 %s204, 1
          %s1282 = smul.addr %s1281, 8
          %s1283 = scalar_lea.vmem [#allocation2], %s1282
          %1284 = dma.done %s1280, 128
        $region64: #{tpu_custom_call.1} parent=59 // pred_fallthru
          _
      $region60: #{tpu_custom_call.1} parent=5 // pred_fallthru
        _
    $region6: #{tpu_custom_call.1} parent=1 // loop_footer
      %s21 = sadd.s32 1, %s17
    $region7: #{tpu_custom_call.1} parent=1 // loop_footer_branch
      %16 = sbr.rel target = $region3
    $region8: #{tpu_custom_call.1} parent=1 // loop_exit
      _
    %1285 = vsyncpa [#allocation3], 1
    %s1286 = scalar_lea.sflag [#allocation3], 1
    %1287 = vsyncpa %s1286, 1

</llo_original>
